<compile_context>
chip_gen: v7x
topology: tpu7x:2x2x1
jax: 0.10.0
libtpu: 0.0.40
codegen_flags: <defaults>
</compile_context>

<pallas_src>
import functools
import math

import jax
import jax.numpy as jnp
from jax.experimental import pallas as pl
from jax.experimental.pallas import tpu as pltpu


# ----------------------------- shared math helpers -----------------------------

def _erf_kernel(x):
    # Abramowitz & Stegun 7.1.26 rational approximation of erf (|err| <= 1.5e-7),
    # built only from exp/mul/add/where so it lowers on every TPU generation
    # (avoids depending on a lax.erf lowering inside Mosaic).
    a1, a2, a3, a4, a5 = (0.254829592, -0.284496736, 1.421413741,
                          -1.453152027, 1.061405429)
    p = 0.3275911
    ax = jnp.abs(x)
    t = 1.0 / (1.0 + p * ax)
    poly = ((((a5 * t + a4) * t + a3) * t + a2) * t + a1) * t
    y = 1.0 - poly * jnp.exp(-(ax * ax))
    return jnp.where(x < 0.0, -y, y)


def _uer_gelu_kernel(x):
    # gelu(x) = x * 0.5 * (1 + erf(x / sqrt(2)))  (exact erf form used by UER)
    return 0.5 * x * (1.0 + _erf_kernel(x * (1.0 / math.sqrt(2.0))))


def _uer_gelu_ref(x):
    return 0.5 * x * (1.0 + jax.lax.erf(x * (1.0 / math.sqrt(2.0))))


def _uer_layer_norm_ref(x, gamma, beta, eps=1e-6):
    # UER LayerNorm: gamma * (x - mean) / (std + eps) + beta, torch.std unbiased.
    h = x.shape[-1]
    mean = jnp.mean(x, axis=-1, keepdims=True)
    diff = x - mean
    var = jnp.sum(diff * diff, axis=-1, keepdims=True) / (h - 1)
    std = jnp.sqrt(var)
    return gamma * diff / (std + eps) + beta


def _uer_layer_norm_kernel(x, gamma, beta, eps=1e-6):
    # Same math; the divide goes through pl.reciprocal (exact path).
    h = x.shape[-1]
    mean = jnp.mean(x, axis=-1, keepdims=True)
    diff = x - mean
    var = jnp.sum(diff * diff, axis=-1, keepdims=True) / (h - 1)
    std = jnp.sqrt(var)
    return gamma * (diff * pl.reciprocal(std + eps, approx=False)) + beta


# --------------------------------- Pallas kernel --------------------------------

def bert_encoder_kernel(emb_ref, kmask_ref,
                        wqkv_ref, wo_ref, w1_ref, w2_ref,
                        bqkv_ref, b1_ref, vecs_ref,
                        out_ref, x_scratch, *, heads_num):
    # Grid: (batch_tiles, layers).  One batch tile, one transformer layer per step.
    l = pl.program_id(1)

    @pl.when(l == 0)
    def _():
        x_scratch[...] = emb_ref[...].astype(jnp.float32)

    x = x_scratch[...]                         # [bt, S, H] f32 residual stream
    bt, S, H = x.shape
    nh = heads_num
    dh = H // nh
    cdt = wqkv_ref.dtype                       # matmul input dtype (bf16 or f32)

    vecs = vecs_ref[0]                         # [6, H] packed per-layer vectors (f32)
    bo, g1, be1 = vecs[0:1], vecs[1:2], vecs[2:3]
    b2, g2, be2 = vecs[3:4], vecs[4:5], vecs[5:6]
    kmask = kmask_ref[...]                     # [bt, 1, S] additive key mask (f32)

    xf = x.reshape(bt * S, H)

    # ---- fused QKV projection: ONE lane-dense [bt*S, H] @ [H, 3H] matmul ----
    # (1/sqrt(dh) is folded into the Q columns of wqkv / bqkv by the packer.)
    qkv = jnp.dot(xf.astype(cdt), wqkv_ref[0],
                  preferred_element_type=jnp.float32) + bqkv_ref[0]
    qkv = qkv.reshape(bt, S, 3 * H)

    # ---- per-head scaled dot-product attention ----
    # Only the inherently per-head [S,S] score / softmax / context part loops over
    # heads (static lane slices of the fused QKV output; batch dim stays leading).
    ctx_heads = []
    for h in range(nh):
        q = qkv[:, :, h * dh:(h + 1) * dh]                 # [bt, S, dh]
        k = qkv[:, :, H + h * dh:H + (h + 1) * dh]
        v = qkv[:, :, 2 * H + h * dh:2 * H + (h + 1) * dh]
        s = jnp.einsum("bqd,bkd->bqk", q.astype(cdt), k.astype(cdt),
                       preferred_element_type=jnp.float32)
        s = s + kmask                                      # broadcast over queries
        s = s - jnp.max(s, axis=-1, keepdims=True)
        p = jnp.exp(s)
        den = jnp.sum(p, axis=-1, keepdims=True)
        inv = pl.reciprocal(den, approx=True)
        inv = inv * (2.0 - den * inv)                      # one Newton step -> ~exact
        c = jnp.einsum("bqk,bkd->bqd", p.astype(cdt), v.astype(cdt),
                       preferred_element_type=jnp.float32)
        ctx_heads.append(c * inv)                          # deferred softmax norm
    ctx = jnp.concatenate(ctx_heads, axis=-1).reshape(bt * S, H)

    # ---- fused output projection: ONE [bt*S, H] @ [H, H] matmul (K = H) ----
    attn_out = jnp.dot(ctx.astype(cdt), wo_ref[0],
                       preferred_element_type=jnp.float32) + bo
    # dropout_1 is identity at inference
    x1 = _uer_layer_norm_kernel(attn_out + xf, g1, be1)

    # ---- position-wise feed forward ----
    h1 = _uer_gelu_kernel(jnp.dot(x1.astype(cdt), w1_ref[0],
                                  preferred_element_type=jnp.float32) + b1_ref[0])
    h2 = jnp.dot(h1.astype(cdt), w2_ref[0],
                 preferred_element_type=jnp.float32) + b2
    # dropout_2 is identity at inference
    x2 = _uer_layer_norm_kernel(h2 + x1, g2, be2)

    x_scratch[...] = x2.reshape(bt, S, H)

    @pl.when(l == pl.num_programs(1) - 1)
    def _():
        out_ref[...] = x2.reshape(bt, S, H).astype(out_ref.dtype)


# ------------------------------------ packing ------------------------------------

def pack_bert_params(params, *, heads_num, compute_dtype=jnp.bfloat16):
    """One-time repack (call OUTSIDE the forward path and reuse):
      * fused QKV weight/bias [L, H, 3H] / [L, 1, 3H] with 1/sqrt(dh) folded into Q,
      * bf16 (or compute_dtype) casts of the four big matrices,
      * the six small H-wide per-layer vectors packed into one [L, 6, H] array."""
    L, H, _ = params["wq"].shape
    dh = H // heads_num
    scale = 1.0 / math.sqrt(float(dh))
    wdt = compute_dtype

    wqkv = jnp.concatenate([params["wq"] * scale, params["wk"], params["wv"]],
                           axis=-1).astype(wdt)                       # [L, H, 3H]
    bqkv = jnp.concatenate([params["bq"] * scale, params["bk"], params["bv"]],
                           axis=-1).astype(jnp.float32)               # [L, 1, 3H]
    vecs = jnp.concatenate([params["bo"], params["g1"], params["be1"],
                            params["b2"], params["g2"], params["be2"]],
                           axis=1).astype(jnp.float32)                # [L, 6, H]
    return {
        "wqkv": wqkv,
        "bqkv": bqkv,
        "wo": params["wo"].astype(wdt),
        "w1": params["w1"].astype(wdt),
        "b1": params["b1"].astype(jnp.float32),
        "w2": params["w2"].astype(wdt),
        "vecs": vecs,
        "heads_num": heads_num,
    }


# ------------------------------------ wrapper ------------------------------------

def _pick_batch_tile(batch):
    # Largest tile <= 4 that divides `batch` while keeping >= 2 batch-grid steps
    # (so both v7x TensorCores get work); falls back to 1.
    if batch <= 1:
        return 1
    bt = min(4, batch // 2)
    while bt > 1 and batch % bt:
        bt -= 1
    return max(bt, 1)


def _vmem_limit_bytes(weights, bt, S, H, F, emb_itemsize):
    # double-buffered per-layer weights + IO tiles + scratch + live activations.
    per_layer_w = sum(math.prod(w.shape[1:]) * w.dtype.itemsize for w in weights)
    io_tiles = bt * S * H * (emb_itemsize + 4) + bt * S * 4
    scratch = bt * S * H * 4
    act = (bt * S * 3 * H * 4 +          # fused qkv (f32)
           2 * bt * S * S * 4 +          # one head's scores + probs (f32)
           bt * S * H * 4 +              # context (f32)
           bt * S * F * 4)               # FFN hidden (f32)
    est = 2 * per_layer_w + 2 * io_tiles + scratch + act + (16 << 20)
    try:
        cap = int(pltpu.get_tpu_info().vmem_capacity_bytes)
    except Exception:
        cap = 64 << 20
    return int(min(max(est, 32 << 20), 100 << 20, max(cap - (4 << 20), 16 << 20)))


def bert_encoder(emb, seg, packed, *, batch_tile=None):
    """Pallas BertEncoder forward.  `packed` comes from pack_bert_params."""
    B, S, H = emb.shape
    L = packed["wqkv"].shape[0]
    F = packed["w1"].shape[-1]
    nh = packed["heads_num"]

    bt = batch_tile if batch_tile is not None else _pick_batch_tile(B)
    assert B % bt == 0, f"batch {B} must be divisible by batch_tile {bt}"
    nb = B // bt

    # Additive key mask, [B, 1, S] (query-row invariant; broadcast in-kernel).
    kmask = ((1.0 - (seg > 0).astype(jnp.float32)) * -10000.0)[:, None, :]

    weights = [packed["wqkv"], packed["wo"], packed["w1"], packed["w2"],
               packed["bqkv"], packed["b1"], packed["vecs"]]

    def wspec(w):  # per-layer weight streaming: block index follows l only
        return pl.BlockSpec((1,) + w.shape[1:], lambda i, l: (l, 0, 0))

    vmem_limit = _vmem_limit_bytes(weights, bt, S, H, F, emb.dtype.itemsize)

    kernel = functools.partial(bert_encoder_kernel, heads_num=nh)

    return pl.pallas_call(
        kernel,
        out_shape=jax.ShapeDtypeStruct((B, S, H), emb.dtype),
        grid_spec=pltpu.PrefetchScalarGridSpec(
            num_scalar_prefetch=0,
            grid=(nb, L),
            in_specs=[pl.BlockSpec((bt, S, H), lambda i, l: (i, 0, 0)),
                      pl.BlockSpec((bt, 1, S), lambda i, l: (i, 0, 0))]
                     + [wspec(w) for w in weights],
            out_specs=pl.BlockSpec((bt, S, H), lambda i, l: (i, 0, 0)),
            scratch_shapes=[pltpu.VMEM((bt, S, H), jnp.float32)],
        ),
        compiler_params=pltpu.CompilerParams(
            dimension_semantics=("parallel", "arbitrary"),
            vmem_limit_bytes=vmem_limit),
    )(emb, kmask, *weights)


# -------------------------------- pure-JAX reference -------------------------------

def bert_encoder_ref(emb, seg, params, *, layers_num, heads_num):
    B, S, H = emb.shape
    dh = H // heads_num
    m = (seg > 0).astype(jnp.float32)
    mask = (1.0 - jnp.broadcast_to(m[:, None, :], (B, S, S))) * -10000.0

    x = emb.astype(jnp.float32)
    for l in range(layers_num):
        q = x @ params["wq"][l] + params["bq"][l]
        k = x @ params["wk"][l] + params["bk"][l]
        v = x @ params["wv"][l] + params["bv"][l]
        qh = q.reshape(B, S, heads_num, dh).transpose(0, 2, 1, 3)
        kh = k.reshape(B, S, heads_num, dh).transpose(0, 2, 1, 3)
        vh = v.reshape(B, S, heads_num, dh).transpose(0, 2, 1, 3)
        scores = jnp.einsum("bhqd,bhkd->bhqk", qh, kh) / math.sqrt(float(dh))
        scores = scores + mask[:, None]
        probs = jax.nn.softmax(scores, axis=-1)
        ctx = jnp.einsum("bhqk,bhkd->bhqd", probs, vh)
        ctx = ctx.transpose(0, 2, 1, 3).reshape(B, S, H)
        attn_out = ctx @ params["wo"][l] + params["bo"][l]
        x = _uer_layer_norm_ref(attn_out + x, params["g1"][l], params["be1"][l])
        h1 = _uer_gelu_ref(x @ params["w1"][l] + params["b1"][l])
        h2 = h1 @ params["w2"][l] + params["b2"][l]
        x = _uer_layer_norm_ref(h2 + x, params["g2"][l], params["be2"][l])
    return x


# ------------------------------------- main ----------------------------------------

def init_params(key, layers_num, hidden, ff):
    ks = jax.random.split(key, 10)
    scale = 0.05
    L, H, F = layers_num, hidden, ff
    return {
        "wq": scale * jax.random.normal(ks[0], (L, H, H), jnp.float32),
        "bq": scale * jax.random.normal(ks[1], (L, 1, H), jnp.float32),
        "wk": scale * jax.random.normal(ks[2], (L, H, H), jnp.float32),
        "bk": scale * jax.random.normal(ks[3], (L, 1, H), jnp.float32),
        "wv": scale * jax.random.normal(ks[4], (L, H, H), jnp.float32),
        "bv": scale * jax.random.normal(ks[5], (L, 1, H), jnp.float32),
        "wo": scale * jax.random.normal(ks[6], (L, H, H), jnp.float32),
        "bo": scale * jax.random.normal(ks[7], (L, 1, H), jnp.float32),
        "g1": jnp.ones((L, 1, H), jnp.float32),
        "be1": jnp.zeros((L, 1, H), jnp.float32),
        "w1": scale * jax.random.normal(ks[8], (L, H, F), jnp.float32),
        "b1": jnp.zeros((L, 1, F), jnp.float32),
        "w2": scale * jax.random.normal(ks[9], (L, F, H), jnp.float32),
        "b2": jnp.zeros((L, 1, H), jnp.float32),
        "g2": jnp.ones((L, 1, H), jnp.float32),
        "be2": jnp.zeros((L, 1, H), jnp.float32),
    }


if __name__ == "__main__":
    # Small config consistent with the module's forward.
    batch, seq, hidden = 2, 8, 32
    heads_num, ff_size, layers_num = 2, 64, 2

    key = jax.random.PRNGKey(0)
    k_emb, k_par = jax.random.split(key, 2)
    emb = jax.random.normal(k_emb, (batch, seq, hidden), jnp.float32)
    # seg: segment ids; zeros mark padding positions.
    seg = jnp.concatenate(
        [jnp.ones((batch, seq - 3), jnp.int32), jnp.zeros((batch, 3), jnp.int32)],
        axis=1,
    )
    params = init_params(k_par, layers_num, hidden, ff_size)

    ref = bert_encoder_ref(emb, seg, params,
                           layers_num=layers_num, heads_num=heads_num)

    # 1) f32 compute, whole batch in one tile (validates exact semantics + bt>1 path)
    packed_f32 = pack_bert_params(params, heads_num=heads_num,
                                  compute_dtype=jnp.float32)
    out32 = jax.block_until_ready(bert_encoder(emb, seg, packed_f32, batch_tile=2))
    assert out32.shape == (batch, seq, hidden)
    err32 = float(jnp.max(jnp.abs(out32 - ref)))
    assert err32 < 5e-3, f"f32 Pallas output mismatch vs JAX reference: {err32}"

    # 2) bf16 compute (recommended production mode), per-sequence batch grid
    packed_bf16 = pack_bert_params(params, heads_num=heads_num,
                                   compute_dtype=jnp.bfloat16)
    out16 = jax.block_until_ready(bert_encoder(emb, seg, packed_bf16))
    err16 = float(jnp.max(jnp.abs(out16 - ref)))
    assert err16 < 2e-2, f"bf16 Pallas output mismatch vs JAX reference: {err16}"

    print("KERNEL_OK")
</pallas_src>

<mosaic_0001>
module attributes {stable_mosaic.version = 11 : i64} {
  func.func @bert_encoder_kernel(%arg0: i32, %arg1: i32, %arg2: memref<2x8x32xf32, #tpu.memory_space<vmem>>, %arg3: memref<2x1x8xf32, #tpu.memory_space<vmem>>, %arg4: memref<1x32x96xf32, #tpu.memory_space<vmem>>, %arg5: memref<1x32x32xf32, #tpu.memory_space<vmem>>, %arg6: memref<1x32x64xf32, #tpu.memory_space<vmem>>, %arg7: memref<1x64x32xf32, #tpu.memory_space<vmem>>, %arg8: memref<1x1x96xf32, #tpu.memory_space<vmem>>, %arg9: memref<1x1x64xf32, #tpu.memory_space<vmem>>, %arg10: memref<1x6x32xf32, #tpu.memory_space<vmem>>, %arg11: memref<2x8x32xf32, #tpu.memory_space<vmem>>, %arg12: memref<2x8x32xf32, #tpu.memory_space<vmem>>) attributes {dimension_semantics = [#tpu.dimension_semantics<parallel>, #tpu.dimension_semantics<arbitrary>], iteration_bounds = array<i64: 1, 2>, scalar_prefetch = 0 : i64, scratch_operands = 1 : i64, tpu.core_type = #tpu.core_type<tc>, window_params = [{transform_indices = @transform_0, window_bounds = array<i64: 2, 8, 32>}, {transform_indices = @transform_1, window_bounds = array<i64: 2, 1, 8>}, {transform_indices = @transform_2, window_bounds = array<i64: 1, 32, 96>}, {transform_indices = @transform_3, window_bounds = array<i64: 1, 32, 32>}, {transform_indices = @transform_4, window_bounds = array<i64: 1, 32, 64>}, {transform_indices = @transform_5, window_bounds = array<i64: 1, 64, 32>}, {transform_indices = @transform_6, window_bounds = array<i64: 1, 1, 96>}, {transform_indices = @transform_7, window_bounds = array<i64: 1, 1, 64>}, {transform_indices = @transform_8, window_bounds = array<i64: 1, 6, 32>}, {transform_indices = @transform_9, window_bounds = array<i64: 2, 8, 32>}]} {
    %c0_i32 = arith.constant 0 : i32
    %0 = arith.cmpi eq, %arg1, %c0_i32 : i32
    %1 = arith.extui %0 : i1 to i32
    %c0_i32_0 = arith.constant 0 : i32
    %2 = arith.cmpi ne, %1, %c0_i32_0 : i32
    scf.if %2 {
      %c0_69 = arith.constant 0 : index
      %c0_70 = arith.constant 0 : index
      %c0_71 = arith.constant 0 : index
      %172 = vector.load %arg2[%c0_69, %c0_70, %c0_71] : memref<2x8x32xf32, #tpu.memory_space<vmem>>, vector<2x8x32xf32>
      %c0_72 = arith.constant 0 : index
      %c0_73 = arith.constant 0 : index
      %c0_74 = arith.constant 0 : index
      %173 = vector.load %arg12[%c0_72, %c0_73, %c0_74] : memref<2x8x32xf32, #tpu.memory_space<vmem>>, vector<2x8x32xf32>
      tpu.vector_store %arg12[%c0_72, %c0_73, %c0_74], %172 {strides = array<i32>} : memref<2x8x32xf32, #tpu.memory_space<vmem>>, vector<2x8x32xf32>,
    } else {
    }
    %c0 = arith.constant 0 : index
    %c0_1 = arith.constant 0 : index
    %c0_2 = arith.constant 0 : index
    %3 = vector.load %arg12[%c0, %c0_1, %c0_2] : memref<2x8x32xf32, #tpu.memory_space<vmem>>, vector<2x8x32xf32>
    %c0_3 = arith.constant 0 : index
    %c0_4 = arith.constant 0 : index
    %c0_5 = arith.constant 0 : index
    %4 = vector.load %arg10[%c0_3, %c0_4, %c0_5] : memref<1x6x32xf32, #tpu.memory_space<vmem>>, vector<1x6x32xf32>
    %5 = vector.shape_cast %4 : vector<1x6x32xf32> to vector<6x32xf32>
    %6 = vector.extract_strided_slice %5 {offsets = [0, 0], sizes = [1, 32], strides = [1, 1]} : vector<6x32xf32> to vector<1x32xf32>
    %7 = vector.extract_strided_slice %5 {offsets = [1, 0], sizes = [1, 32], strides = [1, 1]} : vector<6x32xf32> to vector<1x32xf32>
    %8 = vector.extract_strided_slice %5 {offsets = [2, 0], sizes = [1, 32], strides = [1, 1]} : vector<6x32xf32> to vector<1x32xf32>
    %9 = vector.extract_strided_slice %5 {offsets = [3, 0], sizes = [1, 32], strides = [1, 1]} : vector<6x32xf32> to vector<1x32xf32>
    %10 = vector.extract_strided_slice %5 {offsets = [4, 0], sizes = [1, 32], strides = [1, 1]} : vector<6x32xf32> to vector<1x32xf32>
    %11 = vector.extract_strided_slice %5 {offsets = [5, 0], sizes = [1, 32], strides = [1, 1]} : vector<6x32xf32> to vector<1x32xf32>
    %c0_6 = arith.constant 0 : index
    %c0_7 = arith.constant 0 : index
    %c0_8 = arith.constant 0 : index
    %12 = vector.load %arg3[%c0_6, %c0_7, %c0_8] : memref<2x1x8xf32, #tpu.memory_space<vmem>>, vector<2x1x8xf32>
    %13 = vector.shape_cast %3 : vector<2x8x32xf32> to vector<16x32xf32>
    %c0_9 = arith.constant 0 : index
    %c0_10 = arith.constant 0 : index
    %c0_11 = arith.constant 0 : index
    %14 = vector.load %arg4[%c0_9, %c0_10, %c0_11] : memref<1x32x96xf32, #tpu.memory_space<vmem>>, vector<1x32x96xf32>
    %15 = vector.shape_cast %14 : vector<1x32x96xf32> to vector<32x96xf32>
    %cst = arith.constant dense<0.000000e+00> : vector<16x96xf32>
    %16 = tpu.matmul %13, %15, %cst {dimension_numbers = #tpu.dot_dimension_numbers<[1], [0], [0], [1], [0, 0, 1, 1], [], []>} : vector<16x32xf32>, vector<32x96xf32>, vector<16x96xf32> -> vector<16x96xf32>
    %c0_12 = arith.constant 0 : index
    %c0_13 = arith.constant 0 : index
    %c0_14 = arith.constant 0 : index
    %17 = vector.load %arg8[%c0_12, %c0_13, %c0_14] : memref<1x1x96xf32, #tpu.memory_space<vmem>>, vector<1x1x96xf32>
    %18 = vector.shape_cast %17 : vector<1x1x96xf32> to vector<1x96xf32>
    %19 = vector.broadcast %18 : vector<1x96xf32> to vector<16x96xf32>
    %20 = arith.addf %16, %19 : vector<16x96xf32>
    %21 = vector.shape_cast %20 : vector<16x96xf32> to vector<2x8x96xf32>
    %22 = vector.extract_strided_slice %21 {offsets = [0, 0, 0], sizes = [2, 8, 16], strides = [1, 1, 1]} : vector<2x8x96xf32> to vector<2x8x16xf32>
    %23 = vector.extract_strided_slice %21 {offsets = [0, 0, 32], sizes = [2, 8, 16], strides = [1, 1, 1]} : vector<2x8x96xf32> to vector<2x8x16xf32>
    %24 = vector.extract_strided_slice %21 {offsets = [0, 0, 64], sizes = [2, 8, 16], strides = [1, 1, 1]} : vector<2x8x96xf32> to vector<2x8x16xf32>
    "tpu.trace_start"() <{level = 10 : i32, message = "bqd,bkd->bqk"}> : () -> ()
    %cst_15 = arith.constant dense<0.000000e+00> : vector<2x8x8xf32>
    %25 = tpu.matmul %22, %23, %cst_15 {dimension_numbers = #tpu.dot_dimension_numbers<[2], [2], [1], [1], [0, 0, 0, 1, 1, 1], [0], [0]>} : vector<2x8x16xf32>, vector<2x8x16xf32>, vector<2x8x8xf32> -> vector<2x8x8xf32>
    "tpu.trace_stop"() : () -> ()
    %26 = vector.broadcast %12 : vector<2x1x8xf32> to vector<2x8x8xf32>
    %27 = arith.addf %25, %26 : vector<2x8x8xf32>
    %cst_16 = arith.constant dense<0xFF800000> : vector<2x8xf32>
    %28 = vector.multi_reduction <maximumf>, %27, %cst_16 [2] : vector<2x8x8xf32> to vector<2x8xf32>
    %29 = vector.shape_cast %28 : vector<2x8xf32> to vector<2x8x1xf32>
    %30 = vector.broadcast %29 : vector<2x8x1xf32> to vector<2x8x8xf32>
    %31 = arith.subf %27, %30 : vector<2x8x8xf32>
    %32 = math.exp %31 : vector<2x8x8xf32>
    %cst_17 = arith.constant dense<0.000000e+00> : vector<2x8xf32>
    %33 = vector.multi_reduction <add>, %32, %cst_17 [2] : vector<2x8x8xf32> to vector<2x8xf32>
    %34 = vector.shape_cast %33 : vector<2x8xf32> to vector<2x8x1xf32>
    %35 = tpu.reciprocal %34 {approx = true} : vector<2x8x1xf32> -> vector<2x8x1xf32>
    %36 = arith.mulf %34, %35 : vector<2x8x1xf32>
    %cst_18 = arith.constant 2.000000e+00 : f32
    %37 = vector.broadcast %cst_18 : f32 to vector<2x8x1xf32>
    %38 = arith.subf %37, %36 : vector<2x8x1xf32>
    %39 = arith.mulf %35, %38 : vector<2x8x1xf32>
    "tpu.trace_start"() <{level = 10 : i32, message = "bqk,bkd->bqd"}> : () -> ()
    %cst_19 = arith.constant dense<0.000000e+00> : vector<2x8x16xf32>
    %40 = tpu.matmul %32, %24, %cst_19 {dimension_numbers = #tpu.dot_dimension_numbers<[2], [1], [1], [2], [0, 0, 0, 1, 1, 2], [0], [0]>} : vector<2x8x8xf32>, vector<2x8x16xf32>, vector<2x8x16xf32> -> vector<2x8x16xf32>
    "tpu.trace_stop"() : () -> ()
    %41 = vector.broadcast %39 : vector<2x8x1xf32> to vector<2x8x16xf32>
    %42 = arith.mulf %40, %41 : vector<2x8x16xf32>
    %43 = vector.extract_strided_slice %21 {offsets = [0, 0, 16], sizes = [2, 8, 16], strides = [1, 1, 1]} : vector<2x8x96xf32> to vector<2x8x16xf32>
    %44 = vector.extract_strided_slice %21 {offsets = [0, 0, 48], sizes = [2, 8, 16], strides = [1, 1, 1]} : vector<2x8x96xf32> to vector<2x8x16xf32>
    %45 = vector.extract_strided_slice %21 {offsets = [0, 0, 80], sizes = [2, 8, 16], strides = [1, 1, 1]} : vector<2x8x96xf32> to vector<2x8x16xf32>
    "tpu.trace_start"() <{level = 10 : i32, message = "bqd,bkd->bqk"}> : () -> ()
    %cst_20 = arith.constant dense<0.000000e+00> : vector<2x8x8xf32>
    %46 = tpu.matmul %43, %44, %cst_20 {dimension_numbers = #tpu.dot_dimension_numbers<[2], [2], [1], [1], [0, 0, 0, 1, 1, 1], [0], [0]>} : vector<2x8x16xf32>, vector<2x8x16xf32>, vector<2x8x8xf32> -> vector<2x8x8xf32>
    "tpu.trace_stop"() : () -> ()
    %47 = vector.broadcast %12 : vector<2x1x8xf32> to vector<2x8x8xf32>
    %48 = arith.addf %46, %47 : vector<2x8x8xf32>
    %cst_21 = arith.constant dense<0xFF800000> : vector<2x8xf32>
    %49 = vector.multi_reduction <maximumf>, %48, %cst_21 [2] : vector<2x8x8xf32> to vector<2x8xf32>
    %50 = vector.shape_cast %49 : vector<2x8xf32> to vector<2x8x1xf32>
    %51 = vector.broadcast %50 : vector<2x8x1xf32> to vector<2x8x8xf32>
    %52 = arith.subf %48, %51 : vector<2x8x8xf32>
    %53 = math.exp %52 : vector<2x8x8xf32>
    %cst_22 = arith.constant dense<0.000000e+00> : vector<2x8xf32>
    %54 = vector.multi_reduction <add>, %53, %cst_22 [2] : vector<2x8x8xf32> to vector<2x8xf32>
    %55 = vector.shape_cast %54 : vector<2x8xf32> to vector<2x8x1xf32>
    %56 = tpu.reciprocal %55 {approx = true} : vector<2x8x1xf32> -> vector<2x8x1xf32>
    %57 = arith.mulf %55, %56 : vector<2x8x1xf32>
    %cst_23 = arith.constant 2.000000e+00 : f32
    %58 = vector.broadcast %cst_23 : f32 to vector<2x8x1xf32>
    %59 = arith.subf %58, %57 : vector<2x8x1xf32>
    %60 = arith.mulf %56, %59 : vector<2x8x1xf32>
    "tpu.trace_start"() <{level = 10 : i32, message = "bqk,bkd->bqd"}> : () -> ()
    %cst_24 = arith.constant dense<0.000000e+00> : vector<2x8x16xf32>
    %61 = tpu.matmul %53, %45, %cst_24 {dimension_numbers = #tpu.dot_dimension_numbers<[2], [1], [1], [2], [0, 0, 0, 1, 1, 2], [0], [0]>} : vector<2x8x8xf32>, vector<2x8x16xf32>, vector<2x8x16xf32> -> vector<2x8x16xf32>
    "tpu.trace_stop"() : () -> ()
    %62 = vector.broadcast %60 : vector<2x8x1xf32> to vector<2x8x16xf32>
    %63 = arith.mulf %61, %62 : vector<2x8x16xf32>
    %64 = tpu.concatenate %42, %63 in 2 : vector<2x8x16xf32>, vector<2x8x16xf32> -> vector<2x8x32xf32>
    %65 = vector.shape_cast %64 : vector<2x8x32xf32> to vector<16x32xf32>
    %c0_25 = arith.constant 0 : index
    %c0_26 = arith.constant 0 : index
    %c0_27 = arith.constant 0 : index
    %66 = vector.load %arg5[%c0_25, %c0_26, %c0_27] : memref<1x32x32xf32, #tpu.memory_space<vmem>>, vector<1x32x32xf32>
    %67 = vector.shape_cast %66 : vector<1x32x32xf32> to vector<32x32xf32>
    %cst_28 = arith.constant dense<0.000000e+00> : vector<16x32xf32>
    %68 = tpu.matmul %65, %67, %cst_28 {dimension_numbers = #tpu.dot_dimension_numbers<[1], [0], [0], [1], [0, 0, 1, 1], [], []>} : vector<16x32xf32>, vector<32x32xf32>, vector<16x32xf32> -> vector<16x32xf32>
    %69 = vector.broadcast %6 : vector<1x32xf32> to vector<16x32xf32>
    %70 = arith.addf %68, %69 : vector<16x32xf32>
    %71 = arith.addf %70, %13 : vector<16x32xf32>
    %cst_29 = arith.constant dense<0.000000e+00> : vector<16xf32>
    %72 = vector.multi_reduction <add>, %71, %cst_29 [1] : vector<16x32xf32> to vector<16xf32>
    %73 = vector.shape_cast %72 : vector<16xf32> to vector<16x1xf32>
    %cst_30 = arith.constant 3.200000e+01 : f32
    %74 = vector.broadcast %cst_30 : f32 to vector<16x1xf32>
    %75 = arith.divf %73, %74 : vector<16x1xf32>
    %76 = vector.broadcast %75 : vector<16x1xf32> to vector<16x32xf32>
    %77 = arith.subf %71, %76 : vector<16x32xf32>
    %78 = arith.mulf %77, %77 : vector<16x32xf32>
    %cst_31 = arith.constant dense<0.000000e+00> : vector<16xf32>
    %79 = vector.multi_reduction <add>, %78, %cst_31 [1] : vector<16x32xf32> to vector<16xf32>
    %80 = vector.shape_cast %79 : vector<16xf32> to vector<16x1xf32>
    %cst_32 = arith.constant 3.100000e+01 : f32
    %81 = vector.broadcast %cst_32 : f32 to vector<16x1xf32>
    %82 = arith.divf %80, %81 : vector<16x1xf32>
    %83 = math.sqrt %82 : vector<16x1xf32>
    %cst_33 = arith.constant 9.99999997E-7 : f32
    %84 = vector.broadcast %cst_33 : f32 to vector<16x1xf32>
    %85 = arith.addf %83, %84 : vector<16x1xf32>
    %86 = tpu.reciprocal %85 : vector<16x1xf32> -> vector<16x1xf32>
    %87 = vector.broadcast %86 : vector<16x1xf32> to vector<16x32xf32>
    %88 = arith.mulf %77, %87 : vector<16x32xf32>
    %89 = vector.broadcast %7 : vector<1x32xf32> to vector<16x32xf32>
    %90 = arith.mulf %89, %88 : vector<16x32xf32>
    %91 = vector.broadcast %8 : vector<1x32xf32> to vector<16x32xf32>
    %92 = arith.addf %90, %91 : vector<16x32xf32>
    %c0_34 = arith.constant 0 : index
    %c0_35 = arith.constant 0 : index
    %c0_36 = arith.constant 0 : index
    %93 = vector.load %arg6[%c0_34, %c0_35, %c0_36] : memref<1x32x64xf32, #tpu.memory_space<vmem>>, vector<1x32x64xf32>
    %94 = vector.shape_cast %93 : vector<1x32x64xf32> to vector<32x64xf32>
    %cst_37 = arith.constant dense<0.000000e+00> : vector<16x64xf32>
    %95 = tpu.matmul %92, %94, %cst_37 {dimension_numbers = #tpu.dot_dimension_numbers<[1], [0], [0], [1], [0, 0, 1, 1], [], []>} : vector<16x32xf32>, vector<32x64xf32>, vector<16x64xf32> -> vector<16x64xf32>
    %c0_38 = arith.constant 0 : index
    %c0_39 = arith.constant 0 : index
    %c0_40 = arith.constant 0 : index
    %96 = vector.load %arg9[%c0_38, %c0_39, %c0_40] : memref<1x1x64xf32, #tpu.memory_space<vmem>>, vector<1x1x64xf32>
    %97 = vector.shape_cast %96 : vector<1x1x64xf32> to vector<1x64xf32>
    %98 = vector.broadcast %97 : vector<1x64xf32> to vector<16x64xf32>
    %99 = arith.addf %95, %98 : vector<16x64xf32>
    %cst_41 = arith.constant 5.000000e-01 : f32
    %100 = vector.broadcast %cst_41 : f32 to vector<16x64xf32>
    %101 = arith.mulf %100, %99 : vector<16x64xf32>
    %cst_42 = arith.constant 0.707106769 : f32
    %102 = vector.broadcast %cst_42 : f32 to vector<16x64xf32>
    %103 = arith.mulf %99, %102 : vector<16x64xf32>
    %104 = math.absf %103 : vector<16x64xf32>
    %cst_43 = arith.constant 0.327591091 : f32
    %105 = vector.broadcast %cst_43 : f32 to vector<16x64xf32>
    %106 = arith.mulf %105, %104 : vector<16x64xf32>
    %cst_44 = arith.constant 1.000000e+00 : f32
    %107 = vector.broadcast %cst_44 : f32 to vector<16x64xf32>
    %108 = arith.addf %107, %106 : vector<16x64xf32>
    %cst_45 = arith.constant 1.000000e+00 : f32
    %109 = vector.broadcast %cst_45 : f32 to vector<16x64xf32>
    %110 = arith.divf %109, %108 : vector<16x64xf32>
    %cst_46 = arith.constant 1.06140542 : f32
    %111 = vector.broadcast %cst_46 : f32 to vector<16x64xf32>
    %112 = arith.mulf %111, %110 : vector<16x64xf32>
    %cst_47 = arith.constant -1.45315206 : f32
    %113 = vector.broadcast %cst_47 : f32 to vector<16x64xf32>
    %114 = arith.addf %112, %113 : vector<16x64xf32>
    %115 = arith.mulf %114, %110 : vector<16x64xf32>
    %cst_48 = arith.constant 1.42141378 : f32
    %116 = vector.broadcast %cst_48 : f32 to vector<16x64xf32>
    %117 = arith.addf %115, %116 : vector<16x64xf32>
    %118 = arith.mulf %117, %110 : vector<16x64xf32>
    %cst_49 = arith.constant -0.284496725 : f32
    %119 = vector.broadcast %cst_49 : f32 to vector<16x64xf32>
    %120 = arith.addf %118, %119 : vector<16x64xf32>
    %121 = arith.mulf %120, %110 : vector<16x64xf32>
    %cst_50 = arith.constant 0.254829586 : f32
    %122 = vector.broadcast %cst_50 : f32 to vector<16x64xf32>
    %123 = arith.addf %121, %122 : vector<16x64xf32>
    %124 = arith.mulf %123, %110 : vector<16x64xf32>
    %125 = arith.mulf %104, %104 : vector<16x64xf32>
    %cst_51 = arith.constant 0.000000e+00 : f32
    %126 = vector.broadcast %cst_51 : f32 to vector<16x64xf32>
    %127 = arith.subf %126, %125 : vector<16x64xf32>
    %128 = math.exp %127 : vector<16x64xf32>
    %129 = arith.mulf %124, %128 : vector<16x64xf32>
    %cst_52 = arith.constant 1.000000e+00 : f32
    %130 = vector.broadcast %cst_52 : f32 to vector<16x64xf32>
    %131 = arith.subf %130, %129 : vector<16x64xf32>
    %cst_53 = arith.constant 0.000000e+00 : f32
    %132 = vector.broadcast %cst_53 : f32 to vector<16x64xf32>
    %133 = arith.cmpf olt, %103, %132 : vector<16x64xf32>
    %cst_54 = arith.constant 0.000000e+00 : f32
    %134 = vector.broadcast %cst_54 : f32 to vector<16x64xf32>
    %135 = arith.subf %134, %131 : vector<16x64xf32>
    %136 = arith.select %133, %135, %131 : vector<16x64xi1>, vector<16x64xf32>
    %cst_55 = arith.constant 1.000000e+00 : f32
    %137 = vector.broadcast %cst_55 : f32 to vector<16x64xf32>
    %138 = arith.addf %137, %136 : vector<16x64xf32>
    %139 = arith.mulf %101, %138 : vector<16x64xf32>
    %c0_56 = arith.constant 0 : index
    %c0_57 = arith.constant 0 : index
    %c0_58 = arith.constant 0 : index
    %140 = vector.load %arg7[%c0_56, %c0_57, %c0_58] : memref<1x64x32xf32, #tpu.memory_space<vmem>>, vector<1x64x32xf32>
    %141 = vector.shape_cast %140 : vector<1x64x32xf32> to vector<64x32xf32>
    %cst_59 = arith.constant dense<0.000000e+00> : vector<16x32xf32>
    %142 = tpu.matmul %139, %141, %cst_59 {dimension_numbers = #tpu.dot_dimension_numbers<[1], [0], [0], [1], [0, 0, 1, 1], [], []>} : vector<16x64xf32>, vector<64x32xf32>, vector<16x32xf32> -> vector<16x32xf32>
    %143 = vector.broadcast %9 : vector<1x32xf32> to vector<16x32xf32>
    %144 = arith.addf %142, %143 : vector<16x32xf32>
    %145 = arith.addf %144, %92 : vector<16x32xf32>
    %cst_60 = arith.constant dense<0.000000e+00> : vector<16xf32>
    %146 = vector.multi_reduction <add>, %145, %cst_60 [1] : vector<16x32xf32> to vector<16xf32>
    %147 = vector.shape_cast %146 : vector<16xf32> to vector<16x1xf32>
    %cst_61 = arith.constant 3.200000e+01 : f32
    %148 = vector.broadcast %cst_61 : f32 to vector<16x1xf32>
    %149 = arith.divf %147, %148 : vector<16x1xf32>
    %150 = vector.broadcast %149 : vector<16x1xf32> to vector<16x32xf32>
    %151 = arith.subf %145, %150 : vector<16x32xf32>
    %152 = arith.mulf %151, %151 : vector<16x32xf32>
    %cst_62 = arith.constant dense<0.000000e+00> : vector<16xf32>
    %153 = vector.multi_reduction <add>, %152, %cst_62 [1] : vector<16x32xf32> to vector<16xf32>
    %154 = vector.shape_cast %153 : vector<16xf32> to vector<16x1xf32>
    %cst_63 = arith.constant 3.100000e+01 : f32
    %155 = vector.broadcast %cst_63 : f32 to vector<16x1xf32>
    %156 = arith.divf %154, %155 : vector<16x1xf32>
    %157 = math.sqrt %156 : vector<16x1xf32>
    %cst_64 = arith.constant 9.99999997E-7 : f32
    %158 = vector.broadcast %cst_64 : f32 to vector<16x1xf32>
    %159 = arith.addf %157, %158 : vector<16x1xf32>
    %160 = tpu.reciprocal %159 : vector<16x1xf32> -> vector<16x1xf32>
    %161 = vector.broadcast %160 : vector<16x1xf32> to vector<16x32xf32>
    %162 = arith.mulf %151, %161 : vector<16x32xf32>
    %163 = vector.broadcast %10 : vector<1x32xf32> to vector<16x32xf32>
    %164 = arith.mulf %163, %162 : vector<16x32xf32>
    %165 = vector.broadcast %11 : vector<1x32xf32> to vector<16x32xf32>
    %166 = arith.addf %164, %165 : vector<16x32xf32>
    %167 = vector.shape_cast %166 : vector<16x32xf32> to vector<2x8x32xf32>
    %c0_65 = arith.constant 0 : index
    %c0_66 = arith.constant 0 : index
    %c0_67 = arith.constant 0 : index
    %168 = vector.load %arg12[%c0_65, %c0_66, %c0_67] : memref<2x8x32xf32, #tpu.memory_space<vmem>>, vector<2x8x32xf32>
    tpu.vector_store %arg12[%c0_65, %c0_66, %c0_67], %167 {strides = array<i32>} : memref<2x8x32xf32, #tpu.memory_space<vmem>>, vector<2x8x32xf32>,
    %c1_i32 = arith.constant 1 : i32
    %169 = arith.cmpi eq, %arg1, %c1_i32 : i32
    %170 = arith.extui %169 : i1 to i32
    %c0_i32_68 = arith.constant 0 : i32
    %171 = arith.cmpi ne, %170, %c0_i32_68 : i32
    scf.if %171 {
      %172 = vector.shape_cast %166 : vector<16x32xf32> to vector<2x8x32xf32>
      %c0_69 = arith.constant 0 : index
      %c0_70 = arith.constant 0 : index
      %c0_71 = arith.constant 0 : index
      %173 = vector.load %arg11[%c0_69, %c0_70, %c0_71] : memref<2x8x32xf32, #tpu.memory_space<vmem>>, vector<2x8x32xf32>
      tpu.vector_store %arg11[%c0_69, %c0_70, %c0_71], %172 {strides = array<i32>} : memref<2x8x32xf32, #tpu.memory_space<vmem>>, vector<2x8x32xf32>,
    } else {
    }
    return
  }
  func.func @transform_0(%arg0: i32, %arg1: i32) -> (i32, i32, i32) {
    %c0_i32 = arith.constant 0 : i32
    %c0_i32_0 = arith.constant 0 : i32
    %c0_i32_1 = arith.constant 0 : i32
    return %arg0, %c0_i32, %c0_i32_0 : i32, i32, i32
  }
  func.func @transform_1(%arg0: i32, %arg1: i32) -> (i32, i32, i32) {
    %c0_i32 = arith.constant 0 : i32
    %c0_i32_0 = arith.constant 0 : i32
    %c0_i32_1 = arith.constant 0 : i32
    return %arg0, %c0_i32, %c0_i32_0 : i32, i32, i32
  }
  func.func @transform_2(%arg0: i32, %arg1: i32) -> (i32, i32, i32) {
    %c0_i32 = arith.constant 0 : i32
    %c0_i32_0 = arith.constant 0 : i32
    %c0_i32_1 = arith.constant 0 : i32
    return %arg1, %c0_i32, %c0_i32_0 : i32, i32, i32
  }
  func.func @transform_3(%arg0: i32, %arg1: i32) -> (i32, i32, i32) {
    %c0_i32 = arith.constant 0 : i32
    %c0_i32_0 = arith.constant 0 : i32
    %c0_i32_1 = arith.constant 0 : i32
    return %arg1, %c0_i32, %c0_i32_0 : i32, i32, i32
  }
  func.func @transform_4(%arg0: i32, %arg1: i32) -> (i32, i32, i32) {
    %c0_i32 = arith.constant 0 : i32
    %c0_i32_0 = arith.constant 0 : i32
    %c0_i32_1 = arith.constant 0 : i32
    return %arg1, %c0_i32, %c0_i32_0 : i32, i32, i32
  }
  func.func @transform_5(%arg0: i32, %arg1: i32) -> (i32, i32, i32) {
    %c0_i32 = arith.constant 0 : i32
    %c0_i32_0 = arith.constant 0 : i32
    %c0_i32_1 = arith.constant 0 : i32
    return %arg1, %c0_i32, %c0_i32_0 : i32, i32, i32
  }
  func.func @transform_6(%arg0: i32, %arg1: i32) -> (i32, i32, i32) {
    %c0_i32 = arith.constant 0 : i32
    %c0_i32_0 = arith.constant 0 : i32
    %c0_i32_1 = arith.constant 0 : i32
    return %arg1, %c0_i32, %c0_i32_0 : i32, i32, i32
  }
  func.func @transform_7(%arg0: i32, %arg1: i32) -> (i32, i32, i32) {
    %c0_i32 = arith.constant 0 : i32
    %c0_i32_0 = arith.constant 0 : i32
    %c0_i32_1 = arith.constant 0 : i32
    return %arg1, %c0_i32, %c0_i32_0 : i32, i32, i32
  }
  func.func @transform_8(%arg0: i32, %arg1: i32) -> (i32, i32, i32) {
    %c0_i32 = arith.constant 0 : i32
    %c0_i32_0 = arith.constant 0 : i32
    %c0_i32_1 = arith.constant 0 : i32
    return %arg1, %c0_i32, %c0_i32_0 : i32, i32, i32
  }
  func.func @transform_9(%arg0: i32, %arg1: i32) -> (i32, i32, i32) {
    %c0_i32 = arith.constant 0 : i32
    %c0_i32_0 = arith.constant 0 : i32
    %c0_i32_1 = arith.constant 0 : i32
    return %arg0, %c0_i32, %c0_i32_0 : i32, i32, i32
  }
}

</mosaic_0001>

<llo_original>
// kernel: tpu_custom_call.1
$region0: #{tpu_custom_call.1}
  #allocation0 [shape = 'u32[]', space=smem, size = 0x4, offset = 0x4, fixed_abs, tag = 'smem constant byte address 0x4 - core index']
  #allocation1 [shape = 'u32[144,128]{1,0:T(1,128)}', space=vmem, size = 0x12000, scoped, tag = 'internal scratch']
  #allocation2 [shape = 'f32[2,8,32]{2,1,0:T(8,128)}', space=vmem, size = 0x2000, scoped, tag = 'scratch operand']
  %s0 = inlined_call_operand.vmem [shape: f32[2,8,32], index: 0, kind: input, shape index: {}]
  %s1 = inlined_call_operand.vmem [shape: f32[2,1,8], index: 1, kind: input, shape index: {}]
  %s2 = inlined_call_operand.vmem [shape: f32[2,32,96], index: 2, kind: input, shape index: {}]
  %s3 = inlined_call_operand.vmem [shape: f32[2,32,32], index: 3, kind: input, shape index: {}]
  %s4 = inlined_call_operand.vmem [shape: f32[2,32,64], index: 4, kind: input, shape index: {}]
  %s5 = inlined_call_operand.vmem [shape: f32[2,64,32], index: 5, kind: input, shape index: {}]
  %s6 = inlined_call_operand.vmem [shape: f32[2,1,96], index: 6, kind: input, shape index: {}]
  %s7 = inlined_call_operand.vmem [shape: f32[2,1,64], index: 7, kind: input, shape index: {}]
  %s8 = inlined_call_operand.vmem [shape: f32[2,6,32], index: 8, kind: input, shape index: {}]
  %s9 = inlined_call_operand.hbm [shape: f32[2,8,32], index: 9, kind: output, shape index: {}]
  %s10 = sld [smem:[#allocation0]]
  $region77: #{tpu_custom_call.1} parent=0
    _
  %s12 = ssub.s32 1, %s10
  %s13 = scalar_select 0, %s12, %s10
  $region1: #{tpu_custom_call.1} parent=0
    #allocation3 [shape = 'u8[8192]{0}', space=vmem, size = 0x2000, scoped, tag = 'output window, operand 0, single buffered']
    #allocation4 [shape = 's32[2]{0}', space=sflag, size = 0x8, scoped, tag = 'scoped memory for tpu_custom_call.1']
    %14 = vsyncpa [#allocation4], 0
    loop: start=0, step=1, limit=4
    $region2: #{tpu_custom_call.1} parent=1 // loop_pre_header
      _
    $region3: #{tpu_custom_call.1} parent=1 // loop_header
      %s16 = sphi 0, %s20
      %p17 = scmp.ge.s32.totalorder %s16, 4
      %s23 = sphi 0, %s35
      %s24 = sphi 0, %s31
      %s25 = sphi 0, %s23
      %s26 = sphi 0, %s24
      %s27 = sphi 0, %s25
      %s28 = sphi 0, %s26
      %s38 = sphi 0, %s40
      %s41 = sphi 0, %s38
      %s42 = sphi 0, %s41
      %s58 = sphi 0, %s42
      %s64 = sphi 0, %s66
      %s67 = sphi 0, %s64
      %s68 = sphi 0, %s67
      %s84 = sphi 0, %s68
      %s90 = sphi 0, %s92
      %s93 = sphi 0, %s90
      %s94 = sphi 0, %s93
      %s110 = sphi 0, %s94
      %s116 = sphi 0, %s118
      %s119 = sphi 0, %s116
      %s120 = sphi 0, %s119
      %s136 = sphi 0, %s120
      %s142 = sphi 0, %s144
      %s145 = sphi 0, %s142
      %s146 = sphi 0, %s145
      %s162 = sphi 0, %s146
      %s168 = sphi 0, %s170
      %s171 = sphi 0, %s168
      %s172 = sphi 0, %s171
      %s188 = sphi 0, %s172
      %s194 = sphi 0, %s196
      %s197 = sphi 0, %s194
      %s198 = sphi 0, %s197
      %s214 = sphi 0, %s198
      %s220 = sphi 0, %s222
      %s223 = sphi 0, %s220
      %s224 = sphi 0, %s223
      %s240 = sphi 0, %s224
      %s246 = sphi 0, %s248
      %s249 = sphi 0, %s246
      %s250 = sphi 0, %s249
      %s266 = sphi 0, %s250
      %s272 = sphi 0, %s274
      %s275 = sphi 0, %s272
      %s276 = sphi 0, %s275
      %s292 = sphi 0, %s276
    $region4: #{tpu_custom_call.1} parent=1 // loop_header_branch
      %19 = sbr.rel (%p17) target = $region8
    $region5: #{tpu_custom_call.1} parent=1 // loop_body
      %s21 = ssub.s32 %s16, 1
      %s22 = ssub.s32 %s16, 2
      %s29 = sadd.s32 1, %s24
      %p30 = scmp.ge.s32.totalorder %s29, 2
      %s31 = scalar_select %p30, 0, %s29
      %s32 = sadd.s32 1, %s23
      %s33 = scalar_select %p30, %s32, %s23
      %p34 = scmp.ge.s32.totalorder %s33, 1
      %s35 = scalar_select %p34, 0, %s33
      %s36 = ssub.s32 %s23, %s35
      %p37 = scmp.eq.s32.totalorder %s36, 0
      %s39 = sadd.s32 %s38, 1
      %s40 = scalar_select %p37, %s38, %s39
      %p43 = pneg %p37
      %p44 = scmp.eq.s32.totalorder %s16, 1
      %p45 = por %p43, %p44
      %p46 = scmp.ne.s32.totalorder %s38, %s41
      %p47 = scmp.eq.s32.totalorder %s16, 0
      %p48 = por %p46, %p47
      %p49 = scmp.ne.s32.totalorder %s38, %s41
      %p50 = scmp.eq.s32.totalorder %s21, 1
      %p51 = por %p49, %p50
      %p52 = scmp.ne.s32.totalorder %s41, %s42
      %p53 = scmp.eq.s32.totalorder %s21, 0
      %p54 = por %p52, %p53
      %p55 = scmp.ne.s32.totalorder %s41, %s42
      %p56 = scmp.eq.s32.totalorder %s22, 1
      %p57 = por %p55, %p56
      %p59 = scmp.ne.s32.totalorder %s42, %s58
      %p60 = scmp.eq.s32.totalorder %s22, 0
      %p61 = por %p59, %p60
      %s62 = ssub.s32 %s23, %s35
      %p63 = scmp.eq.s32.totalorder %s62, 0
      %s65 = sadd.s32 %s64, 1
      %s66 = scalar_select %p63, %s64, %s65
      %p69 = pneg %p63
      %p70 = scmp.eq.s32.totalorder %s16, 1
      %p71 = por %p69, %p70
      %p72 = scmp.ne.s32.totalorder %s64, %s67
      %p73 = scmp.eq.s32.totalorder %s16, 0
      %p74 = por %p72, %p73
      %p75 = scmp.ne.s32.totalorder %s64, %s67
      %p76 = scmp.eq.s32.totalorder %s21, 1
      %p77 = por %p75, %p76
      %p78 = scmp.ne.s32.totalorder %s67, %s68
      %p79 = scmp.eq.s32.totalorder %s21, 0
      %p80 = por %p78, %p79
      %p81 = scmp.ne.s32.totalorder %s67, %s68
      %p82 = scmp.eq.s32.totalorder %s22, 1
      %p83 = por %p81, %p82
      %p85 = scmp.ne.s32.totalorder %s68, %s84
      %p86 = scmp.eq.s32.totalorder %s22, 0
      %p87 = por %p85, %p86
      %s88 = ssub.s32 %s24, %s31
      %p89 = scmp.eq.s32.totalorder %s88, 0
      %s91 = sadd.s32 %s90, 1
      %s92 = scalar_select %p89, %s90, %s91
      %p95 = pneg %p89
      %p96 = scmp.eq.s32.totalorder %s16, 1
      %p97 = por %p95, %p96
      %p98 = scmp.ne.s32.totalorder %s90, %s93
      %p99 = scmp.eq.s32.totalorder %s16, 0
      %p100 = por %p98, %p99
      %p101 = scmp.ne.s32.totalorder %s90, %s93
      %p102 = scmp.eq.s32.totalorder %s21, 1
      %p103 = por %p101, %p102
      %p104 = scmp.ne.s32.totalorder %s93, %s94
      %p105 = scmp.eq.s32.totalorder %s21, 0
      %p106 = por %p104, %p105
      %p107 = scmp.ne.s32.totalorder %s93, %s94
      %p108 = scmp.eq.s32.totalorder %s22, 1
      %p109 = por %p107, %p108
      %p111 = scmp.ne.s32.totalorder %s94, %s110
      %p112 = scmp.eq.s32.totalorder %s22, 0
      %p113 = por %p111, %p112
      %s114 = ssub.s32 %s24, %s31
      %p115 = scmp.eq.s32.totalorder %s114, 0
      %s117 = sadd.s32 %s116, 1
      %s118 = scalar_select %p115, %s116, %s117
      %p121 = pneg %p115
      %p122 = scmp.eq.s32.totalorder %s16, 1
      %p123 = por %p121, %p122
      %p124 = scmp.ne.s32.totalorder %s116, %s119
      %p125 = scmp.eq.s32.totalorder %s16, 0
      %p126 = por %p124, %p125
      %p127 = scmp.ne.s32.totalorder %s116, %s119
      %p128 = scmp.eq.s32.totalorder %s21, 1
      %p129 = por %p127, %p128
      %p130 = scmp.ne.s32.totalorder %s119, %s120
      %p131 = scmp.eq.s32.totalorder %s21, 0
      %p132 = por %p130, %p131
      %p133 = scmp.ne.s32.totalorder %s119, %s120
      %p134 = scmp.eq.s32.totalorder %s22, 1
      %p135 = por %p133, %p134
      %p137 = scmp.ne.s32.totalorder %s120, %s136
      %p138 = scmp.eq.s32.totalorder %s22, 0
      %p139 = por %p137, %p138
      %s140 = ssub.s32 %s24, %s31
      %p141 = scmp.eq.s32.totalorder %s140, 0
      %s143 = sadd.s32 %s142, 1
      %s144 = scalar_select %p141, %s142, %s143
      %p147 = pneg %p141
      %p148 = scmp.eq.s32.totalorder %s16, 1
      %p149 = por %p147, %p148
      %p150 = scmp.ne.s32.totalorder %s142, %s145
      %p151 = scmp.eq.s32.totalorder %s16, 0
      %p152 = por %p150, %p151
      %p153 = scmp.ne.s32.totalorder %s142, %s145
      %p154 = scmp.eq.s32.totalorder %s21, 1
      %p155 = por %p153, %p154
      %p156 = scmp.ne.s32.totalorder %s145, %s146
      %p157 = scmp.eq.s32.totalorder %s21, 0
      %p158 = por %p156, %p157
      %p159 = scmp.ne.s32.totalorder %s145, %s146
      %p160 = scmp.eq.s32.totalorder %s22, 1
      %p161 = por %p159, %p160
      %p163 = scmp.ne.s32.totalorder %s146, %s162
      %p164 = scmp.eq.s32.totalorder %s22, 0
      %p165 = por %p163, %p164
      %s166 = ssub.s32 %s24, %s31
      %p167 = scmp.eq.s32.totalorder %s166, 0
      %s169 = sadd.s32 %s168, 1
      %s170 = scalar_select %p167, %s168, %s169
      %p173 = pneg %p167
      %p174 = scmp.eq.s32.totalorder %s16, 1
      %p175 = por %p173, %p174
      %p176 = scmp.ne.s32.totalorder %s168, %s171
      %p177 = scmp.eq.s32.totalorder %s16, 0
      %p178 = por %p176, %p177
      %p179 = scmp.ne.s32.totalorder %s168, %s171
      %p180 = scmp.eq.s32.totalorder %s21, 1
      %p181 = por %p179, %p180
      %p182 = scmp.ne.s32.totalorder %s171, %s172
      %p183 = scmp.eq.s32.totalorder %s21, 0
      %p184 = por %p182, %p183
      %p185 = scmp.ne.s32.totalorder %s171, %s172
      %p186 = scmp.eq.s32.totalorder %s22, 1
      %p187 = por %p185, %p186
      %p189 = scmp.ne.s32.totalorder %s172, %s188
      %p190 = scmp.eq.s32.totalorder %s22, 0
      %p191 = por %p189, %p190
      %s192 = ssub.s32 %s24, %s31
      %p193 = scmp.eq.s32.totalorder %s192, 0
      %s195 = sadd.s32 %s194, 1
      %s196 = scalar_select %p193, %s194, %s195
      %p199 = pneg %p193
      %p200 = scmp.eq.s32.totalorder %s16, 1
      %p201 = por %p199, %p200
      %p202 = scmp.ne.s32.totalorder %s194, %s197
      %p203 = scmp.eq.s32.totalorder %s16, 0
      %p204 = por %p202, %p203
      %p205 = scmp.ne.s32.totalorder %s194, %s197
      %p206 = scmp.eq.s32.totalorder %s21, 1
      %p207 = por %p205, %p206
      %p208 = scmp.ne.s32.totalorder %s197, %s198
      %p209 = scmp.eq.s32.totalorder %s21, 0
      %p210 = por %p208, %p209
      %p211 = scmp.ne.s32.totalorder %s197, %s198
      %p212 = scmp.eq.s32.totalorder %s22, 1
      %p213 = por %p211, %p212
      %p215 = scmp.ne.s32.totalorder %s198, %s214
      %p216 = scmp.eq.s32.totalorder %s22, 0
      %p217 = por %p215, %p216
      %s218 = ssub.s32 %s24, %s31
      %p219 = scmp.eq.s32.totalorder %s218, 0
      %s221 = sadd.s32 %s220, 1
      %s222 = scalar_select %p219, %s220, %s221
      %p225 = pneg %p219
      %p226 = scmp.eq.s32.totalorder %s16, 1
      %p227 = por %p225, %p226
      %p228 = scmp.ne.s32.totalorder %s220, %s223
      %p229 = scmp.eq.s32.totalorder %s16, 0
      %p230 = por %p228, %p229
      %p231 = scmp.ne.s32.totalorder %s220, %s223
      %p232 = scmp.eq.s32.totalorder %s21, 1
      %p233 = por %p231, %p232
      %p234 = scmp.ne.s32.totalorder %s223, %s224
      %p235 = scmp.eq.s32.totalorder %s21, 0
      %p236 = por %p234, %p235
      %p237 = scmp.ne.s32.totalorder %s223, %s224
      %p238 = scmp.eq.s32.totalorder %s22, 1
      %p239 = por %p237, %p238
      %p241 = scmp.ne.s32.totalorder %s224, %s240
      %p242 = scmp.eq.s32.totalorder %s22, 0
      %p243 = por %p241, %p242
      %s244 = ssub.s32 %s24, %s31
      %p245 = scmp.eq.s32.totalorder %s244, 0
      %s247 = sadd.s32 %s246, 1
      %s248 = scalar_select %p245, %s246, %s247
      %p251 = pneg %p245
      %p252 = scmp.eq.s32.totalorder %s16, 1
      %p253 = por %p251, %p252
      %p254 = scmp.ne.s32.totalorder %s246, %s249
      %p255 = scmp.eq.s32.totalorder %s16, 0
      %p256 = por %p254, %p255
      %p257 = scmp.ne.s32.totalorder %s246, %s249
      %p258 = scmp.eq.s32.totalorder %s21, 1
      %p259 = por %p257, %p258
      %p260 = scmp.ne.s32.totalorder %s249, %s250
      %p261 = scmp.eq.s32.totalorder %s21, 0
      %p262 = por %p260, %p261
      %p263 = scmp.ne.s32.totalorder %s249, %s250
      %p264 = scmp.eq.s32.totalorder %s22, 1
      %p265 = por %p263, %p264
      %p267 = scmp.ne.s32.totalorder %s250, %s266
      %p268 = scmp.eq.s32.totalorder %s22, 0
      %p269 = por %p267, %p268
      %s270 = ssub.s32 %s23, %s35
      %p271 = scmp.eq.s32.totalorder %s270, 0
      %s273 = sadd.s32 %s272, 1
      %s274 = scalar_select %p271, %s272, %s273
      %p277 = pneg %p271
      %p278 = scmp.eq.s32.totalorder %s16, 1
      %p279 = por %p277, %p278
      %p280 = scmp.ne.s32.totalorder %s272, %s275
      %p281 = scmp.eq.s32.totalorder %s16, 0
      %p282 = por %p280, %p281
      %p283 = scmp.ne.s32.totalorder %s272, %s275
      %p284 = scmp.eq.s32.totalorder %s21, 1
      %p285 = por %p283, %p284
      %p286 = scmp.ne.s32.totalorder %s275, %s276
      %p287 = scmp.eq.s32.totalorder %s21, 0
      %p288 = por %p286, %p287
      %p289 = scmp.ne.s32.totalorder %s275, %s276
      %p290 = scmp.eq.s32.totalorder %s22, 1
      %p291 = por %p289, %p290
      %p293 = scmp.ne.s32.totalorder %s276, %s292
      %p294 = scmp.eq.s32.totalorder %s22, 0
      %p295 = por %p293, %p294
      %p296 = scmp.le.s32.totalorder 1, %s16
      %p297 = scmp.lt.s32.totalorder %s16, 3
      %p298 = pnand %p296, %p297
      %p299 = pneg %p298
      // Predicated region
      $region9: #{tpu_custom_call.1} parent=5 // pred_check
        _
      $region10: #{tpu_custom_call.1} parent=5 // pred_check_branch
        %301 = sbr.rel (%p298) target = $region12
      $region11: #{tpu_custom_call.1} parent=5 // pred_region
        %s302 = ssub.s32 %s16, 1
        // Predicated region
        $region13: #{tpu_custom_call.1} parent=11 // pred_check
          %p303 = pneg %p54
        $region14: #{tpu_custom_call.1} parent=11 // pred_check_branch
          %305 = sbr.rel (%p303) target = $region16
        $region15: #{tpu_custom_call.1} parent=11 // pred_region
          %s306 = smul.u32 2, %s25
          %p307 = scmp.lt.s32.totalorder %s306, 1
          %s308 = scalar_select %p307, %s306, 1
          %s309 = smul.addr %s308, 8
          %s310 = scalar_lea.vmem %s0, %s309
          %s311 = smul.u32 2, %s25
        $region16: #{tpu_custom_call.1} parent=11 // pred_fallthru
          _
        // Predicated region
        $region17: #{tpu_custom_call.1} parent=11 // pred_check
          %p312 = pneg %p80
        $region18: #{tpu_custom_call.1} parent=11 // pred_check_branch
          %314 = sbr.rel (%p312) target = $region20
        $region19: #{tpu_custom_call.1} parent=11 // pred_region
          %s315 = smul.u32 2, %s25
          %p316 = scmp.lt.s32.totalorder %s315, 1
          %s317 = scalar_select %p316, %s315, 1
          %s318 = scalar_lea.vmem %s1, %s317
          %s319 = smul.u32 2, %s25
        $region20: #{tpu_custom_call.1} parent=11 // pred_fallthru
          _
      $region12: #{tpu_custom_call.1} parent=5 // pred_fallthru
        _
      %p320 = scmp.lt.s32.totalorder %s16, 2
      // Predicated region
      $region21: #{tpu_custom_call.1} parent=5 // pred_check
        %p321 = pneg %p320
      $region22: #{tpu_custom_call.1} parent=5 // pred_check_branch
        %323 = sbr.rel (%p321) target = $region24
      $region23: #{tpu_custom_call.1} parent=5 // pred_region
        // Predicated region
        $region25: #{tpu_custom_call.1} parent=23 // pred_check
          %p324 = pneg %p100
        $region26: #{tpu_custom_call.1} parent=23 // pred_check_branch
          %326 = sbr.rel (%p324) target = $region28
        $region27: #{tpu_custom_call.1} parent=23 // pred_region
          %p327 = scmp.lt.s32.totalorder %s24, 1
          %s328 = scalar_select %p327, %s24, 1
          %s329 = smul.addr %s328, 4
          %s330 = smul.addr %s329, 8
          %s331 = scalar_lea.vmem %s2, %s330
        $region28: #{tpu_custom_call.1} parent=23 // pred_fallthru
          _
        // Predicated region
        $region29: #{tpu_custom_call.1} parent=23 // pred_check
          %p332 = pneg %p126
        $region30: #{tpu_custom_call.1} parent=23 // pred_check_branch
          %334 = sbr.rel (%p332) target = $region32
        $region31: #{tpu_custom_call.1} parent=23 // pred_region
          %p335 = scmp.lt.s32.totalorder %s24, 1
          %s336 = scalar_select %p335, %s24, 1
          %s337 = smul.addr %s336, 4
          %s338 = smul.addr %s337, 8
          %s339 = scalar_lea.vmem %s3, %s338
        $region32: #{tpu_custom_call.1} parent=23 // pred_fallthru
          _
        // Predicated region
        $region33: #{tpu_custom_call.1} parent=23 // pred_check
          %p340 = pneg %p152
        $region34: #{tpu_custom_call.1} parent=23 // pred_check_branch
          %342 = sbr.rel (%p340) target = $region36
        $region35: #{tpu_custom_call.1} parent=23 // pred_region
          %p343 = scmp.lt.s32.totalorder %s24, 1
          %s344 = scalar_select %p343, %s24, 1
          %s345 = smul.addr %s344, 4
          %s346 = smul.addr %s345, 8
          %s347 = scalar_lea.vmem %s4, %s346
        $region36: #{tpu_custom_call.1} parent=23 // pred_fallthru
          _
        // Predicated region
        $region37: #{tpu_custom_call.1} parent=23 // pred_check
          %p348 = pneg %p178
        $region38: #{tpu_custom_call.1} parent=23 // pred_check_branch
          %350 = sbr.rel (%p348) target = $region40
        $region39: #{tpu_custom_call.1} parent=23 // pred_region
          %p351 = scmp.lt.s32.totalorder %s24, 1
          %s352 = scalar_select %p351, %s24, 1
          %s353 = smul.addr %s352, 8
          %s354 = smul.addr %s353, 8
          %s355 = scalar_lea.vmem %s5, %s354
        $region40: #{tpu_custom_call.1} parent=23 // pred_fallthru
          _
        // Predicated region
        $region41: #{tpu_custom_call.1} parent=23 // pred_check
          %p356 = pneg %p204
        $region42: #{tpu_custom_call.1} parent=23 // pred_check_branch
          %358 = sbr.rel (%p356) target = $region44
        $region43: #{tpu_custom_call.1} parent=23 // pred_region
          %p359 = scmp.lt.s32.totalorder %s24, 1
          %s360 = scalar_select %p359, %s24, 1
          %s361 = scalar_lea.vmem %s6, %s360
        $region44: #{tpu_custom_call.1} parent=23 // pred_fallthru
          _
        // Predicated region
        $region45: #{tpu_custom_call.1} parent=23 // pred_check
          %p362 = pneg %p230
        $region46: #{tpu_custom_call.1} parent=23 // pred_check_branch
          %364 = sbr.rel (%p362) target = $region48
        $region47: #{tpu_custom_call.1} parent=23 // pred_region
          %p365 = scmp.lt.s32.totalorder %s24, 1
          %s366 = scalar_select %p365, %s24, 1
          %s367 = scalar_lea.vmem %s7, %s366
        $region48: #{tpu_custom_call.1} parent=23 // pred_fallthru
          _
        // Predicated region
        $region49: #{tpu_custom_call.1} parent=23 // pred_check
          %p368 = pneg %p256
        $region50: #{tpu_custom_call.1} parent=23 // pred_check_branch
          %370 = sbr.rel (%p368) target = $region52
        $region51: #{tpu_custom_call.1} parent=23 // pred_region
          %p371 = scmp.lt.s32.totalorder %s24, 1
          %s372 = scalar_select %p371, %s24, 1
          %s373 = smul.addr %s372, 8
          %s374 = scalar_lea.vmem %s8, %s373
        $region52: #{tpu_custom_call.1} parent=23 // pred_fallthru
          _
      $region24: #{tpu_custom_call.1} parent=5 // pred_fallthru
        _
      %p375 = scmp.le.s32.totalorder 1, %s16
      %p376 = scmp.lt.s32.totalorder %s16, 3
      %p377 = pnand %p375, %p376
      %p378 = pneg %p377
      // Predicated region
      $region53: #{tpu_custom_call.1} parent=5 // pred_check
        _
      $region54: #{tpu_custom_call.1} parent=5 // pred_check_branch
        %380 = sbr.rel (%p377) target = $region56
      $region55: #{tpu_custom_call.1} parent=5 // pred_region
        %s381 = ssub.s32 %s16, 1
        %s382 = smul.u32 2, %s25
        %p383 = scmp.lt.s32.totalorder %s382, 1
        %s384 = scalar_select %p383, %s382, 1
        %s385 = smul.addr %s384, 8
        %s386 = scalar_lea.vmem %s0, %s385
        %p387 = pneg %p54
        %p388 = pneg %p51
        %s389 = smul.u32 2, %s25
        %p390 = scmp.lt.s32.totalorder %s389, 1
        %s391 = scalar_select %p390, %s389, 1
        %s392 = scalar_lea.vmem %s1, %s391
        %p393 = pneg %p80
        %p394 = pneg %p77
        %p395 = scmp.lt.s32.totalorder %s26, 1
        %s396 = scalar_select %p395, %s26, 1
        %s397 = smul.addr %s396, 4
        %s398 = smul.addr %s397, 8
        %s399 = scalar_lea.vmem %s2, %s398
        %p400 = pneg %p106
        %p401 = pneg %p103
        %p402 = scmp.lt.s32.totalorder %s26, 1
        %s403 = scalar_select %p402, %s26, 1
        %s404 = smul.addr %s403, 4
        %s405 = smul.addr %s404, 8
        %s406 = scalar_lea.vmem %s3, %s405
        %p407 = pneg %p132
        %p408 = pneg %p129
        %p409 = scmp.lt.s32.totalorder %s26, 1
        %s410 = scalar_select %p409, %s26, 1
        %s411 = smul.addr %s410, 4
        %s412 = smul.addr %s411, 8
        %s413 = scalar_lea.vmem %s4, %s412
        %p414 = pneg %p158
        %p415 = pneg %p155
        %p416 = scmp.lt.s32.totalorder %s26, 1
        %s417 = scalar_select %p416, %s26, 1
        %s418 = smul.addr %s417, 8
        %s419 = smul.addr %s418, 8
        %s420 = scalar_lea.vmem %s5, %s419
        %p421 = pneg %p184
        %p422 = pneg %p181
        %p423 = scmp.lt.s32.totalorder %s26, 1
        %s424 = scalar_select %p423, %s26, 1
        %s425 = scalar_lea.vmem %s6, %s424
        %p426 = pneg %p210
        %p427 = pneg %p207
        %p428 = scmp.lt.s32.totalorder %s26, 1
        %s429 = scalar_select %p428, %s26, 1
        %s430 = scalar_lea.vmem %s7, %s429
        %p431 = pneg %p236
        %p432 = pneg %p233
        %p433 = scmp.lt.s32.totalorder %s26, 1
        %s434 = scalar_select %p433, %s26, 1
        %s435 = smul.addr %s434, 8
        %s436 = scalar_lea.vmem %s8, %s435
        %p437 = pneg %p262
        %p438 = pneg %p259
        %p439 = pneg %p288
        %p440 = pneg %p285
        %s441 = smul.u32 2, %s25
        %p442 = scmp.lt.s32.totalorder %s441, 1
        %s443 = scalar_select %p442, %s441, 1
        %s444 = smul.addr %s443, 8
        %s445 = scalar_lea.vmem %s0, %s444
        %s446 = smul.u32 2, %s25
        %s447 = smul.u32 2, %s25
        %p448 = scmp.lt.s32.totalorder %s447, 1
        %s449 = scalar_select %p448, %s447, 1
        %s450 = scalar_lea.vmem %s1, %s449
        %s451 = smul.u32 2, %s25
        %p452 = scmp.lt.s32.totalorder %s26, 1
        %s453 = scalar_select %p452, %s26, 1
        %s454 = smul.addr %s453, 4
        %s455 = smul.addr %s454, 8
        %s456 = scalar_lea.vmem %s2, %s455
        %p457 = scmp.lt.s32.totalorder %s26, 1
        %s458 = scalar_select %p457, %s26, 1
        %s459 = smul.addr %s458, 4
        %s460 = smul.addr %s459, 8
        %s461 = scalar_lea.vmem %s3, %s460
        %p462 = scmp.lt.s32.totalorder %s26, 1
        %s463 = scalar_select %p462, %s26, 1
        %s464 = smul.addr %s463, 4
        %s465 = smul.addr %s464, 8
        %s466 = scalar_lea.vmem %s4, %s465
        %p467 = scmp.lt.s32.totalorder %s26, 1
        %s468 = scalar_select %p467, %s26, 1
        %s469 = smul.addr %s468, 8
        %s470 = smul.addr %s469, 8
        %s471 = scalar_lea.vmem %s5, %s470
        %p472 = scmp.lt.s32.totalorder %s26, 1
        %s473 = scalar_select %p472, %s26, 1
        %s474 = scalar_lea.vmem %s6, %s473
        %p475 = scmp.lt.s32.totalorder %s26, 1
        %s476 = scalar_select %p475, %s26, 1
        %s477 = scalar_lea.vmem %s7, %s476
        %p478 = scmp.lt.s32.totalorder %s26, 1
        %s479 = scalar_select %p478, %s26, 1
        %s480 = smul.addr %s479, 8
        %s481 = scalar_lea.vmem %s8, %s480
        %s482 = smul.u32 2, %s25
        %p483 = scmp.eq.s32.totalorder %s26, 0
        // Predicated region
        $region57: #{tpu_custom_call.1} parent=55 // pred_check
          %p484 = pneg %p483
        $region58: #{tpu_custom_call.1} parent=55 // pred_check_branch
          %486 = sbr.rel (%p484) target = $region60
        $region59: #{tpu_custom_call.1} parent=55 // pred_region
          %v487 = vld [vmem:[%s445] sm:$0xff]
          %v488 = vld [vmem:[%s445 + $0x8] sm:$0xff]
          %vm489 = vcmask 261120
          %490 = vst.msk [vmem:[#allocation2] sm:$0xff] %vm489, %v487
          %491 = vst.msk [vmem:[#allocation2 + $0x8] sm:$0xff] %vm489, %v488
        $region60: #{tpu_custom_call.1} parent=55 // pred_fallthru
          _
        %v492 = vld [vmem:[#allocation2] sm:$0xff]
        %v493 = vld [vmem:[#allocation2 + $0x8] sm:$0xff]
        %v494 = vld [vmem:[%s481] sm:$0x3f]
        %v495 = vld [vmem:[%s450] sm:$0x1]
        %v496 = vld [vmem:[%s450 + $0x1] sm:$0x1]
        %v497 = vld [vmem:[%s456] sm:$0xff]
        %v498 = vld [vmem:[%s456 + $0x8] sm:$0xff]
        %v499 = vld [vmem:[%s456 + $0x10] sm:$0xff]
        %v500 = vld [vmem:[%s456 + $0x18] sm:$0xff]
        %v501 = vld [vmem:[%s474] sm:$0x1]
        %v503 = vlaneseq
        %v504 = vshrl.u32 %v503, 7
        %v505 = vsub.s32 0, %v504
        %v506 = vrot.slane %v501, %v505
        %vm508 = vcmask 261120
        %v510 = vsel %vm508, %v492, 0
        %v513 = vsel %vm508, %v493, 0
        %515 = vmatprep.subr.mxu0 0.0
        %516 = vmatpush1.msra.mxu0 %v497
        %517 = vmatprep.subr.mxu0 0.0
        %518 = vmatpush1.msra.mxu0 %v498
        %519 = vmatprep.subr.mxu0 0.0
        %520 = vmatpush1.msra.mxu0 %v499
        %521 = vmatprep.subr.mxu0 0.0
        %522 = vmatpush1.msra.mxu0 %v500
        %523 = vmatprep.subr.mxu0 0.0
        %524 = vmatpush1.msra.mxu0 0.0
        %525 = vmatprep.subr.mxu0 0.0
        %526 = vmatpush1.msra.mxu0 0.0
        %527 = vmatprep.subr.mxu0 0.0
        %528 = vmatpush1.msra.mxu0 0.0
        %529 = vmatprep.subr.mxu0 0.0
        %530 = vmatpush1.msra.mxu0 0.0
        %531 = vmatprep.subr.mxu0 0.0
        %532 = vmatpush1.msra.mxu0 0.0
        %533 = vmatprep.subr.mxu0 0.0
        %534 = vmatpush1.msra.mxu0 0.0
        %535 = vmatprep.subr.mxu0 0.0
        %536 = vmatpush1.msra.mxu0 0.0
        %537 = vmatprep.subr.mxu0 0.0
        %538 = vmatpush1.msra.mxu0 0.0
        %539 = vmatprep.subr.mxu0 0.0
        %540 = vmatpush1.msra.mxu0 0.0
        %541 = vmatprep.subr.mxu0 0.0
        %542 = vmatpush1.msra.mxu0 0.0
        %543 = vmatprep.subr.mxu0 0.0
        %544 = vmatpush1.msra.mxu0 0.0
        %545 = vmatprep.subr.mxu0 0.0
        %546 = vmatpush1.msra.mxu0 0.0
        %547 = vmatprep.subr.mxu0 0.0
        %548 = vmatpush1.msra.mxu0 0.0
        %549 = vmatprep.subr.mxu0 0.0
        %550 = vmatpush1.msra.mxu0 0.0
        %551 = vmatprep.subr.mxu0 0.0
        %552 = vmatpush1.msra.mxu0 0.0
        %553 = vmatprep.subr.mxu0 0.0
        %554 = vmatpush1.msra.mxu0 0.0
        %555 = vmatprep.subr.mxu0 0.0
        %556 = vmatpush1.msra.mxu0 0.0
        %557 = vmatprep.subr.mxu0 0.0
        %558 = vmatpush1.msra.mxu0 0.0
        %559 = vmatprep.subr.mxu0 0.0
        %560 = vmatpush1.msra.mxu0 0.0
        %561 = vmatprep.subr.mxu0 0.0
        %562 = vmatpush1.msra.mxu0 0.0
        %563 = vmatprep.subr.mxu0 0.0
        %564 = vmatpush1.msra.mxu0 0.0
        %565 = vmatprep.subr.mxu0 0.0
        %566 = vmatpush1.msra.mxu0 0.0
        %567 = vmatprep.subr.mxu0 0.0
        %568 = vmatpush1.msra.mxu0 0.0
        %569 = vmatprep.subr.mxu0 0.0
        %570 = vmatpush1.msra.mxu0 0.0
        %571 = vmatprep.subr.mxu0 0.0
        %572 = vmatpush1.msra.mxu0 0.0
        %573 = vmatprep.subr.mxu0 0.0
        %574 = vmatpush1.msra.mxu0 0.0
        %575 = vmatprep.subr.mxu0 0.0
        %576 = vmatpush1.msra.mxu0 0.0
        %577 = vmatprep.subr.mxu0 0.0
        %578 = vmatpush1.msra.mxu0 0.0
        %579 = vmatprep.mubr.f32.mxu0 0.0
        %580 = vmatmul.mubr.f32.gmra.mrb[0].mxu0 %v510
        %v581 = vpop.f32.mrb[0].mxu0
        %v582 = vadd.f32 %v506, %v581
        %v583 = vpop.f32.mrb[0].mxu0
        %584 = vmatprep.mubr.f32.mxu0 0.0
        %585 = vmatmul.mubr.f32.gmra.mrb[0].mxu0 %v513
        %v586 = vpop.f32.mrb[0].mxu0
        %v587 = vadd.f32 %v506, %v586
        %v588 = vpop.f32.mrb[0].mxu0
        %589 = vdwg.mxu0
        %v592 = vlaneseq
        %v593 = vshrl.u32 %v592, 7
        %v594 = vsub.s32 0, %v593
        %v595 = vrot.slane %v495, %v594
        %v596 = vlaneseq
        %v597 = vshrl.u32 %v596, 7
        %v598 = vsub.s32 0, %v597
        %v599 = vrot.slane %v496, %v598
        %603 = vrot.lane.b32.xlu0 %v582, 96
        %v604 = vpop.permute.xlu0 %603
        %vm605 = vcmask 130048
        %v606 = vsel %vm605, %v582, 0
        %v608 = vsel %vm605, %v604, 0
        %610 = vmatprep.subr.mxu0 0.0
        %611 = vmatpush1.xpose.msra.mxu0 %v608
        %612 = vmatprep.subr.mxu0 0.0
        %613 = vmatpush1.xpose.msra.mxu0 0.0
        %614 = vmatprep.subr.mxu0 0.0
        %615 = vmatpush1.xpose.msra.mxu0 0.0
        %616 = vmatprep.subr.mxu0 0.0
        %617 = vmatpush1.xpose.msra.mxu0 0.0
        %618 = vmatprep.subr.mxu0 0.0
        %619 = vmatpush1.xpose.msra.mxu0 0.0
        %620 = vmatprep.subr.mxu0 0.0
        %621 = vmatpush1.xpose.msra.mxu0 0.0
        %622 = vmatprep.subr.mxu0 0.0
        %623 = vmatpush1.xpose.msra.mxu0 0.0
        %624 = vmatprep.subr.mxu0 0.0
        %625 = vmatpush1.xpose.msra.mxu0 0.0
        %626 = vmatprep.subr.mxu0 0.0
        %627 = vmatpush1.xpose.msra.mxu0 0.0
        %628 = vmatprep.subr.mxu0 0.0
        %629 = vmatpush1.xpose.msra.mxu0 0.0
        %630 = vmatprep.subr.mxu0 0.0
        %631 = vmatpush1.xpose.msra.mxu0 0.0
        %632 = vmatprep.subr.mxu0 0.0
        %633 = vmatpush1.xpose.msra.mxu0 0.0
        %634 = vmatprep.subr.mxu0 0.0
        %635 = vmatpush1.xpose.msra.mxu0 0.0
        %636 = vmatprep.subr.mxu0 0.0
        %637 = vmatpush1.xpose.msra.mxu0 0.0
        %638 = vmatprep.subr.mxu0 0.0
        %639 = vmatpush1.xpose.msra.mxu0 0.0
        %640 = vmatprep.subr.mxu0 0.0
        %641 = vmatpush1.xpose.msra.mxu0 0.0
        %642 = vmatprep.subr.mxu0 0.0
        %643 = vmatpush1.xpose.msra.mxu0 0.0
        %644 = vmatprep.subr.mxu0 0.0
        %645 = vmatpush1.xpose.msra.mxu0 0.0
        %646 = vmatprep.subr.mxu0 0.0
        %647 = vmatpush1.xpose.msra.mxu0 0.0
        %648 = vmatprep.subr.mxu0 0.0
        %649 = vmatpush1.xpose.msra.mxu0 0.0
        %650 = vmatprep.subr.mxu0 0.0
        %651 = vmatpush1.xpose.msra.mxu0 0.0
        %652 = vmatprep.subr.mxu0 0.0
        %653 = vmatpush1.xpose.msra.mxu0 0.0
        %654 = vmatprep.subr.mxu0 0.0
        %655 = vmatpush1.xpose.msra.mxu0 0.0
        %656 = vmatprep.subr.mxu0 0.0
        %657 = vmatpush1.xpose.msra.mxu0 0.0
        %658 = vmatprep.subr.mxu0 0.0
        %659 = vmatpush1.xpose.msra.mxu0 0.0
        %660 = vmatprep.subr.mxu0 0.0
        %661 = vmatpush1.xpose.msra.mxu0 0.0
        %662 = vmatprep.subr.mxu0 0.0
        %663 = vmatpush1.xpose.msra.mxu0 0.0
        %664 = vmatprep.subr.mxu0 0.0
        %665 = vmatpush1.xpose.msra.mxu0 0.0
        %666 = vmatprep.subr.mxu0 0.0
        %667 = vmatpush1.xpose.msra.mxu0 0.0
        %668 = vmatprep.subr.mxu0 0.0
        %669 = vmatpush1.xpose.msra.mxu0 0.0
        %670 = vmatprep.subr.mxu0 0.0
        %671 = vmatpush1.xpose.msra.mxu0 0.0
        %672 = vmatprep.subr.mxu0 0.0
        %673 = vmatpush1.xpose.msra.mxu0 0.0
        %674 = vmatprep.mubr.f32.mxu0 0.0
        %675 = vmatmul.mubr.f32.gmra.mrb[0].mxu0 %v606
        %v676 = vpop.f32.mrb[0].mxu0
        %v677 = vadd.f32 %v595, %v676
        %v678 = vpop.f32.mrb[0].mxu0
        %679 = vdwg.mxu0
        %681 = vrot.lane.b32.xlu0 %v587, 96
        %v682 = vpop.permute.xlu0 %681
        %v683 = vsel %vm605, %v587, 0
        %v685 = vsel %vm605, %v682, 0
        %687 = vmatprep.subr.mxu0 0.0
        %688 = vmatpush1.xpose.msra.mxu0 %v685
        %689 = vmatprep.subr.mxu0 0.0
        %690 = vmatpush1.xpose.msra.mxu0 0.0
        %691 = vmatprep.subr.mxu0 0.0
        %692 = vmatpush1.xpose.msra.mxu0 0.0
        %693 = vmatprep.subr.mxu0 0.0
        %694 = vmatpush1.xpose.msra.mxu0 0.0
        %695 = vmatprep.subr.mxu0 0.0
        %696 = vmatpush1.xpose.msra.mxu0 0.0
        %697 = vmatprep.subr.mxu0 0.0
        %698 = vmatpush1.xpose.msra.mxu0 0.0
        %699 = vmatprep.subr.mxu0 0.0
        %700 = vmatpush1.xpose.msra.mxu0 0.0
        %701 = vmatprep.subr.mxu0 0.0
        %702 = vmatpush1.xpose.msra.mxu0 0.0
        %703 = vmatprep.subr.mxu0 0.0
        %704 = vmatpush1.xpose.msra.mxu0 0.0
        %705 = vmatprep.subr.mxu0 0.0
        %706 = vmatpush1.xpose.msra.mxu0 0.0
        %707 = vmatprep.subr.mxu0 0.0
        %708 = vmatpush1.xpose.msra.mxu0 0.0
        %709 = vmatprep.subr.mxu0 0.0
        %710 = vmatpush1.xpose.msra.mxu0 0.0
        %711 = vmatprep.subr.mxu0 0.0
        %712 = vmatpush1.xpose.msra.mxu0 0.0
        %713 = vmatprep.subr.mxu0 0.0
        %714 = vmatpush1.xpose.msra.mxu0 0.0
        %715 = vmatprep.subr.mxu0 0.0
        %716 = vmatpush1.xpose.msra.mxu0 0.0
        %717 = vmatprep.subr.mxu0 0.0
        %718 = vmatpush1.xpose.msra.mxu0 0.0
        %719 = vmatprep.subr.mxu0 0.0
        %720 = vmatpush1.xpose.msra.mxu0 0.0
        %721 = vmatprep.subr.mxu0 0.0
        %722 = vmatpush1.xpose.msra.mxu0 0.0
        %723 = vmatprep.subr.mxu0 0.0
        %724 = vmatpush1.xpose.msra.mxu0 0.0
        %725 = vmatprep.subr.mxu0 0.0
        %726 = vmatpush1.xpose.msra.mxu0 0.0
        %727 = vmatprep.subr.mxu0 0.0
        %728 = vmatpush1.xpose.msra.mxu0 0.0
        %729 = vmatprep.subr.mxu0 0.0
        %730 = vmatpush1.xpose.msra.mxu0 0.0
        %731 = vmatprep.subr.mxu0 0.0
        %732 = vmatpush1.xpose.msra.mxu0 0.0
        %733 = vmatprep.subr.mxu0 0.0
        %734 = vmatpush1.xpose.msra.mxu0 0.0
        %735 = vmatprep.subr.mxu0 0.0
        %736 = vmatpush1.xpose.msra.mxu0 0.0
        %737 = vmatprep.subr.mxu0 0.0
        %738 = vmatpush1.xpose.msra.mxu0 0.0
        %739 = vmatprep.subr.mxu0 0.0
        %740 = vmatpush1.xpose.msra.mxu0 0.0
        %741 = vmatprep.subr.mxu0 0.0
        %742 = vmatpush1.xpose.msra.mxu0 0.0
        %743 = vmatprep.subr.mxu0 0.0
        %744 = vmatpush1.xpose.msra.mxu0 0.0
        %745 = vmatprep.subr.mxu0 0.0
        %746 = vmatpush1.xpose.msra.mxu0 0.0
        %747 = vmatprep.subr.mxu0 0.0
        %748 = vmatpush1.xpose.msra.mxu0 0.0
        %749 = vmatprep.subr.mxu0 0.0
        %750 = vmatpush1.xpose.msra.mxu0 0.0
        %751 = vmatprep.mubr.f32.mxu0 0.0
        %752 = vmatmul.mubr.f32.gmra.mrb[0].mxu0 %v683
        %v753 = vpop.f32.mrb[0].mxu0
        %v754 = vadd.f32 %v599, %v753
        %v755 = vpop.f32.mrb[0].mxu0
        %756 = vdwg.mxu0
        %vm757 = vcmask 64512
        %v758 = vsel %vm757, %v677, -inf
        %759 = vmax.xlane.f32.xlu0 %v758
        %v760 = vpop.xlane.xlu0 %759
        %v761 = vsel %vm757, %v754, -inf
        %762 = vmax.xlane.f32.xlu0 %v761
        %v763 = vpop.xlane.xlu0 %762
        %v764 = vsub.f32 %v677, %v760
        %v765 = vsub.f32 %v754, %v763
        %v766 = vmul.f32 %v764, 1.442695
        %v767 = vpow.pop %v766
        %v768 = vmul.f32 %v765, 1.442695
        %v769 = vpow.pop %v768
        %v770 = vsel %vm757, %v767, 0.0
        %771 = vadd.xlane.f32.xlu0 %v770
        %v772 = vpop.xlane.xlu0 %771
        %v773 = vsel %vm757, %v769, 0.0
        %774 = vadd.xlane.f32.xlu0 %v773
        %v775 = vpop.xlane.xlu0 %774
        %v776 = vrcp.pop %v772
        %v777 = vrcp.pop %v775
        %v778 = vmul.f32 %v772, %v776
        %v779 = vmul.f32 %v775, %v777
        %v780 = vsub.f32 2.0, %v778
        %v781 = vsub.f32 2.0, %v779
        %v782 = vmul.f32 %v776, %v780
        %v783 = vmul.f32 %v777, %v781
        %784 = vrot.lane.b32.xlu0 %v582, 64
        %v785 = vpop.permute.xlu0 %784
        %v788 = vsel %vm757, %v767, 0
        %790 = vmatprep.subr.mxu0 0.0
        %791 = vmatpush1.msra.mxu0 %v785
        %792 = vmatprep.subr.mxu0 0.0
        %793 = vmatpush1.msra.mxu0 0.0
        %794 = vmatprep.subr.mxu0 0.0
        %795 = vmatpush1.msra.mxu0 0.0
        %796 = vmatprep.subr.mxu0 0.0
        %797 = vmatpush1.msra.mxu0 0.0
        %798 = vmatprep.subr.mxu0 0.0
        %799 = vmatpush1.msra.mxu0 0.0
        %800 = vmatprep.subr.mxu0 0.0
        %801 = vmatpush1.msra.mxu0 0.0
        %802 = vmatprep.subr.mxu0 0.0
        %803 = vmatpush1.msra.mxu0 0.0
        %804 = vmatprep.subr.mxu0 0.0
        %805 = vmatpush1.msra.mxu0 0.0
        %806 = vmatprep.subr.mxu0 0.0
        %807 = vmatpush1.msra.mxu0 0.0
        %808 = vmatprep.subr.mxu0 0.0
        %809 = vmatpush1.msra.mxu0 0.0
        %810 = vmatprep.subr.mxu0 0.0
        %811 = vmatpush1.msra.mxu0 0.0
        %812 = vmatprep.subr.mxu0 0.0
        %813 = vmatpush1.msra.mxu0 0.0
        %814 = vmatprep.subr.mxu0 0.0
        %815 = vmatpush1.msra.mxu0 0.0
        %816 = vmatprep.subr.mxu0 0.0
        %817 = vmatpush1.msra.mxu0 0.0
        %818 = vmatprep.subr.mxu0 0.0
        %819 = vmatpush1.msra.mxu0 0.0
        %820 = vmatprep.subr.mxu0 0.0
        %821 = vmatpush1.msra.mxu0 0.0
        %822 = vmatprep.subr.mxu0 0.0
        %823 = vmatpush1.msra.mxu0 0.0
        %824 = vmatprep.subr.mxu0 0.0
        %825 = vmatpush1.msra.mxu0 0.0
        %826 = vmatprep.subr.mxu0 0.0
        %827 = vmatpush1.msra.mxu0 0.0
        %828 = vmatprep.subr.mxu0 0.0
        %829 = vmatpush1.msra.mxu0 0.0
        %830 = vmatprep.subr.mxu0 0.0
        %831 = vmatpush1.msra.mxu0 0.0
        %832 = vmatprep.subr.mxu0 0.0
        %833 = vmatpush1.msra.mxu0 0.0
        %834 = vmatprep.subr.mxu0 0.0
        %835 = vmatpush1.msra.mxu0 0.0
        %836 = vmatprep.subr.mxu0 0.0
        %837 = vmatpush1.msra.mxu0 0.0
        %838 = vmatprep.subr.mxu0 0.0
        %839 = vmatpush1.msra.mxu0 0.0
        %840 = vmatprep.subr.mxu0 0.0
        %841 = vmatpush1.msra.mxu0 0.0
        %842 = vmatprep.subr.mxu0 0.0
        %843 = vmatpush1.msra.mxu0 0.0
        %844 = vmatprep.subr.mxu0 0.0
        %845 = vmatpush1.msra.mxu0 0.0
        %846 = vmatprep.subr.mxu0 0.0
        %847 = vmatpush1.msra.mxu0 0.0
        %848 = vmatprep.subr.mxu0 0.0
        %849 = vmatpush1.msra.mxu0 0.0
        %850 = vmatprep.subr.mxu0 0.0
        %851 = vmatpush1.msra.mxu0 0.0
        %852 = vmatprep.subr.mxu0 0.0
        %853 = vmatpush1.msra.mxu0 0.0
        %854 = vmatprep.mubr.f32.mxu0 0.0
        %855 = vmatmul.mubr.f32.gmra.mrb[0].mxu0 %v788
        %v856 = vpop.f32.mrb[0].mxu0
        %v857 = vadd.f32 0.0, %v856
        %v858 = vpop.f32.mrb[0].mxu0
        %859 = vdwg.mxu0
        %860 = vrot.lane.b32.xlu0 %v587, 64
        %v861 = vpop.permute.xlu0 %860
        %v864 = vsel %vm757, %v769, 0
        %866 = vmatprep.subr.mxu0 0.0
        %867 = vmatpush1.msra.mxu0 %v861
        %868 = vmatprep.subr.mxu0 0.0
        %869 = vmatpush1.msra.mxu0 0.0
        %870 = vmatprep.subr.mxu0 0.0
        %871 = vmatpush1.msra.mxu0 0.0
        %872 = vmatprep.subr.mxu0 0.0
        %873 = vmatpush1.msra.mxu0 0.0
        %874 = vmatprep.subr.mxu0 0.0
        %875 = vmatpush1.msra.mxu0 0.0
        %876 = vmatprep.subr.mxu0 0.0
        %877 = vmatpush1.msra.mxu0 0.0
        %878 = vmatprep.subr.mxu0 0.0
        %879 = vmatpush1.msra.mxu0 0.0
        %880 = vmatprep.subr.mxu0 0.0
        %881 = vmatpush1.msra.mxu0 0.0
        %882 = vmatprep.subr.mxu0 0.0
        %883 = vmatpush1.msra.mxu0 0.0
        %884 = vmatprep.subr.mxu0 0.0
        %885 = vmatpush1.msra.mxu0 0.0
        %886 = vmatprep.subr.mxu0 0.0
        %887 = vmatpush1.msra.mxu0 0.0
        %888 = vmatprep.subr.mxu0 0.0
        %889 = vmatpush1.msra.mxu0 0.0
        %890 = vmatprep.subr.mxu0 0.0
        %891 = vmatpush1.msra.mxu0 0.0
        %892 = vmatprep.subr.mxu0 0.0
        %893 = vmatpush1.msra.mxu0 0.0
        %894 = vmatprep.subr.mxu0 0.0
        %895 = vmatpush1.msra.mxu0 0.0
        %896 = vmatprep.subr.mxu0 0.0
        %897 = vmatpush1.msra.mxu0 0.0
        %898 = vmatprep.subr.mxu0 0.0
        %899 = vmatpush1.msra.mxu0 0.0
        %900 = vmatprep.subr.mxu0 0.0
        %901 = vmatpush1.msra.mxu0 0.0
        %902 = vmatprep.subr.mxu0 0.0
        %903 = vmatpush1.msra.mxu0 0.0
        %904 = vmatprep.subr.mxu0 0.0
        %905 = vmatpush1.msra.mxu0 0.0
        %906 = vmatprep.subr.mxu0 0.0
        %907 = vmatpush1.msra.mxu0 0.0
        %908 = vmatprep.subr.mxu0 0.0
        %909 = vmatpush1.msra.mxu0 0.0
        %910 = vmatprep.subr.mxu0 0.0
        %911 = vmatpush1.msra.mxu0 0.0
        %912 = vmatprep.subr.mxu0 0.0
        %913 = vmatpush1.msra.mxu0 0.0
        %914 = vmatprep.subr.mxu0 0.0
        %915 = vmatpush1.msra.mxu0 0.0
        %916 = vmatprep.subr.mxu0 0.0
        %917 = vmatpush1.msra.mxu0 0.0
        %918 = vmatprep.subr.mxu0 0.0
        %919 = vmatpush1.msra.mxu0 0.0
        %920 = vmatprep.subr.mxu0 0.0
        %921 = vmatpush1.msra.mxu0 0.0
        %922 = vmatprep.subr.mxu0 0.0
        %923 = vmatpush1.msra.mxu0 0.0
        %924 = vmatprep.subr.mxu0 0.0
        %925 = vmatpush1.msra.mxu0 0.0
        %926 = vmatprep.subr.mxu0 0.0
        %927 = vmatpush1.msra.mxu0 0.0
        %928 = vmatprep.subr.mxu0 0.0
        %929 = vmatpush1.msra.mxu0 0.0
        %930 = vmatprep.mubr.f32.mxu0 0.0
        %931 = vmatmul.mubr.f32.gmra.mrb[0].mxu0 %v864
        %v932 = vpop.f32.mrb[0].mxu0
        %v933 = vadd.f32 0.0, %v932
        %v934 = vpop.f32.mrb[0].mxu0
        %935 = vdwg.mxu0
        %v936 = vmul.f32 %v857, %v782
        %v937 = vmul.f32 %v933, %v783
        %938 = vrot.lane.b32.xlu0 %v582, 112
        %v939 = vpop.permute.xlu0 %938
        %940 = vrot.lane.b32.xlu0 %v582, 80
        %v941 = vpop.permute.xlu0 %940
        %v942 = vsel %vm605, %v939, 0
        %v944 = vsel %vm605, %v941, 0
        %946 = vmatprep.subr.mxu0 0.0
        %947 = vmatpush1.xpose.msra.mxu0 %v944
        %948 = vmatprep.subr.mxu0 0.0
        %949 = vmatpush1.xpose.msra.mxu0 0.0
        %950 = vmatprep.subr.mxu0 0.0
        %951 = vmatpush1.xpose.msra.mxu0 0.0
        %952 = vmatprep.subr.mxu0 0.0
        %953 = vmatpush1.xpose.msra.mxu0 0.0
        %954 = vmatprep.subr.mxu0 0.0
        %955 = vmatpush1.xpose.msra.mxu0 0.0
        %956 = vmatprep.subr.mxu0 0.0
        %957 = vmatpush1.xpose.msra.mxu0 0.0
        %958 = vmatprep.subr.mxu0 0.0
        %959 = vmatpush1.xpose.msra.mxu0 0.0
        %960 = vmatprep.subr.mxu0 0.0
        %961 = vmatpush1.xpose.msra.mxu0 0.0
        %962 = vmatprep.subr.mxu0 0.0
        %963 = vmatpush1.xpose.msra.mxu0 0.0
        %964 = vmatprep.subr.mxu0 0.0
        %965 = vmatpush1.xpose.msra.mxu0 0.0
        %966 = vmatprep.subr.mxu0 0.0
        %967 = vmatpush1.xpose.msra.mxu0 0.0
        %968 = vmatprep.subr.mxu0 0.0
        %969 = vmatpush1.xpose.msra.mxu0 0.0
        %970 = vmatprep.subr.mxu0 0.0
        %971 = vmatpush1.xpose.msra.mxu0 0.0
        %972 = vmatprep.subr.mxu0 0.0
        %973 = vmatpush1.xpose.msra.mxu0 0.0
        %974 = vmatprep.subr.mxu0 0.0
        %975 = vmatpush1.xpose.msra.mxu0 0.0
        %976 = vmatprep.subr.mxu0 0.0
        %977 = vmatpush1.xpose.msra.mxu0 0.0
        %978 = vmatprep.subr.mxu0 0.0
        %979 = vmatpush1.xpose.msra.mxu0 0.0
        %980 = vmatprep.subr.mxu0 0.0
        %981 = vmatpush1.xpose.msra.mxu0 0.0
        %982 = vmatprep.subr.mxu0 0.0
        %983 = vmatpush1.xpose.msra.mxu0 0.0
        %984 = vmatprep.subr.mxu0 0.0
        %985 = vmatpush1.xpose.msra.mxu0 0.0
        %986 = vmatprep.subr.mxu0 0.0
        %987 = vmatpush1.xpose.msra.mxu0 0.0
        %988 = vmatprep.subr.mxu0 0.0
        %989 = vmatpush1.xpose.msra.mxu0 0.0
        %990 = vmatprep.subr.mxu0 0.0
        %991 = vmatpush1.xpose.msra.mxu0 0.0
        %992 = vmatprep.subr.mxu0 0.0
        %993 = vmatpush1.xpose.msra.mxu0 0.0
        %994 = vmatprep.subr.mxu0 0.0
        %995 = vmatpush1.xpose.msra.mxu0 0.0
        %996 = vmatprep.subr.mxu0 0.0
        %997 = vmatpush1.xpose.msra.mxu0 0.0
        %998 = vmatprep.subr.mxu0 0.0
        %999 = vmatpush1.xpose.msra.mxu0 0.0
        %1000 = vmatprep.subr.mxu0 0.0
        %1001 = vmatpush1.xpose.msra.mxu0 0.0
        %1002 = vmatprep.subr.mxu0 0.0
        %1003 = vmatpush1.xpose.msra.mxu0 0.0
        %1004 = vmatprep.subr.mxu0 0.0
        %1005 = vmatpush1.xpose.msra.mxu0 0.0
        %1006 = vmatprep.subr.mxu0 0.0
        %1007 = vmatpush1.xpose.msra.mxu0 0.0
        %1008 = vmatprep.subr.mxu0 0.0
        %1009 = vmatpush1.xpose.msra.mxu0 0.0
        %1010 = vmatprep.mubr.f32.mxu0 0.0
        %1011 = vmatmul.mubr.f32.gmra.mrb[0].mxu0 %v942
        %v1012 = vpop.f32.mrb[0].mxu0
        %v1013 = vadd.f32 %v595, %v1012
        %v1014 = vpop.f32.mrb[0].mxu0
        %1015 = vdwg.mxu0
        %1016 = vrot.lane.b32.xlu0 %v587, 112
        %v1017 = vpop.permute.xlu0 %1016
        %1018 = vrot.lane.b32.xlu0 %v587, 80
        %v1019 = vpop.permute.xlu0 %1018
        %v1020 = vsel %vm605, %v1017, 0
        %v1022 = vsel %vm605, %v1019, 0
        %1024 = vmatprep.subr.mxu0 0.0
        %1025 = vmatpush1.xpose.msra.mxu0 %v1022
        %1026 = vmatprep.subr.mxu0 0.0
        %1027 = vmatpush1.xpose.msra.mxu0 0.0
        %1028 = vmatprep.subr.mxu0 0.0
        %1029 = vmatpush1.xpose.msra.mxu0 0.0
        %1030 = vmatprep.subr.mxu0 0.0
        %1031 = vmatpush1.xpose.msra.mxu0 0.0
        %1032 = vmatprep.subr.mxu0 0.0
        %1033 = vmatpush1.xpose.msra.mxu0 0.0
        %1034 = vmatprep.subr.mxu0 0.0
        %1035 = vmatpush1.xpose.msra.mxu0 0.0
        %1036 = vmatprep.subr.mxu0 0.0
        %1037 = vmatpush1.xpose.msra.mxu0 0.0
        %1038 = vmatprep.subr.mxu0 0.0
        %1039 = vmatpush1.xpose.msra.mxu0 0.0
        %1040 = vmatprep.subr.mxu0 0.0
        %1041 = vmatpush1.xpose.msra.mxu0 0.0
        %1042 = vmatprep.subr.mxu0 0.0
        %1043 = vmatpush1.xpose.msra.mxu0 0.0
        %1044 = vmatprep.subr.mxu0 0.0
        %1045 = vmatpush1.xpose.msra.mxu0 0.0
        %1046 = vmatprep.subr.mxu0 0.0
        %1047 = vmatpush1.xpose.msra.mxu0 0.0
        %1048 = vmatprep.subr.mxu0 0.0
        %1049 = vmatpush1.xpose.msra.mxu0 0.0
        %1050 = vmatprep.subr.mxu0 0.0
        %1051 = vmatpush1.xpose.msra.mxu0 0.0
        %1052 = vmatprep.subr.mxu0 0.0
        %1053 = vmatpush1.xpose.msra.mxu0 0.0
        %1054 = vmatprep.subr.mxu0 0.0
        %1055 = vmatpush1.xpose.msra.mxu0 0.0
        %1056 = vmatprep.subr.mxu0 0.0
        %1057 = vmatpush1.xpose.msra.mxu0 0.0
        %1058 = vmatprep.subr.mxu0 0.0
        %1059 = vmatpush1.xpose.msra.mxu0 0.0
        %1060 = vmatprep.subr.mxu0 0.0
        %1061 = vmatpush1.xpose.msra.mxu0 0.0
        %1062 = vmatprep.subr.mxu0 0.0
        %1063 = vmatpush1.xpose.msra.mxu0 0.0
        %1064 = vmatprep.subr.mxu0 0.0
        %1065 = vmatpush1.xpose.msra.mxu0 0.0
        %1066 = vmatprep.subr.mxu0 0.0
        %1067 = vmatpush1.xpose.msra.mxu0 0.0
        %1068 = vmatprep.subr.mxu0 0.0
        %1069 = vmatpush1.xpose.msra.mxu0 0.0
        %1070 = vmatprep.subr.mxu0 0.0
        %1071 = vmatpush1.xpose.msra.mxu0 0.0
        %1072 = vmatprep.subr.mxu0 0.0
        %1073 = vmatpush1.xpose.msra.mxu0 0.0
        %1074 = vmatprep.subr.mxu0 0.0
        %1075 = vmatpush1.xpose.msra.mxu0 0.0
        %1076 = vmatprep.subr.mxu0 0.0
        %1077 = vmatpush1.xpose.msra.mxu0 0.0
        %1078 = vmatprep.subr.mxu0 0.0
        %1079 = vmatpush1.xpose.msra.mxu0 0.0
        %1080 = vmatprep.subr.mxu0 0.0
        %1081 = vmatpush1.xpose.msra.mxu0 0.0
        %1082 = vmatprep.subr.mxu0 0.0
        %1083 = vmatpush1.xpose.msra.mxu0 0.0
        %1084 = vmatprep.subr.mxu0 0.0
        %1085 = vmatpush1.xpose.msra.mxu0 0.0
        %1086 = vmatprep.subr.mxu0 0.0
        %1087 = vmatpush1.xpose.msra.mxu0 0.0
        %1088 = vmatprep.mubr.f32.mxu0 0.0
        %1089 = vmatmul.mubr.f32.gmra.mrb[0].mxu0 %v1020
        %v1090 = vpop.f32.mrb[0].mxu0
        %v1091 = vadd.f32 %v599, %v1090
        %v1092 = vpop.f32.mrb[0].mxu0
        %1093 = vdwg.mxu0
        %v1094 = vsel %vm757, %v1013, -inf
        %1095 = vmax.xlane.f32.xlu0 %v1094
        %v1096 = vpop.xlane.xlu0 %1095
        %v1097 = vsel %vm757, %v1091, -inf
        %1098 = vmax.xlane.f32.xlu0 %v1097
        %v1099 = vpop.xlane.xlu0 %1098
        %v1100 = vsub.f32 %v1013, %v1096
        %v1101 = vsub.f32 %v1091, %v1099
        %v1102 = vmul.f32 %v1100, 1.442695
        %v1103 = vpow.pop %v1102
        %v1104 = vmul.f32 %v1101, 1.442695
        %v1105 = vpow.pop %v1104
        %v1106 = vsel %vm757, %v1103, 0.0
        %1107 = vadd.xlane.f32.xlu0 %v1106
        %v1108 = vpop.xlane.xlu0 %1107
        %v1109 = vsel %vm757, %v1105, 0.0
        %1110 = vadd.xlane.f32.xlu0 %v1109
        %v1111 = vpop.xlane.xlu0 %1110
        %v1112 = vrcp.pop %v1108
        %v1113 = vrcp.pop %v1111
        %v1114 = vmul.f32 %v1108, %v1112
        %v1115 = vmul.f32 %v1111, %v1113
        %v1116 = vsub.f32 2.0, %v1114
        %v1117 = vsub.f32 2.0, %v1115
        %v1118 = vmul.f32 %v1112, %v1116
        %v1119 = vmul.f32 %v1113, %v1117
        %1120 = vrot.lane.b32.xlu0 %v582, 48
        %v1121 = vpop.permute.xlu0 %1120
        %v1124 = vsel %vm757, %v1103, 0
        %1126 = vmatprep.subr.mxu0 0.0
        %1127 = vmatpush1.msra.mxu0 %v1121
        %1128 = vmatprep.subr.mxu0 0.0
        %1129 = vmatpush1.msra.mxu0 0.0
        %1130 = vmatprep.subr.mxu0 0.0
        %1131 = vmatpush1.msra.mxu0 0.0
        %1132 = vmatprep.subr.mxu0 0.0
        %1133 = vmatpush1.msra.mxu0 0.0
        %1134 = vmatprep.subr.mxu0 0.0
        %1135 = vmatpush1.msra.mxu0 0.0
        %1136 = vmatprep.subr.mxu0 0.0
        %1137 = vmatpush1.msra.mxu0 0.0
        %1138 = vmatprep.subr.mxu0 0.0
        %1139 = vmatpush1.msra.mxu0 0.0
        %1140 = vmatprep.subr.mxu0 0.0
        %1141 = vmatpush1.msra.mxu0 0.0
        %1142 = vmatprep.subr.mxu0 0.0
        %1143 = vmatpush1.msra.mxu0 0.0
        %1144 = vmatprep.subr.mxu0 0.0
        %1145 = vmatpush1.msra.mxu0 0.0
        %1146 = vmatprep.subr.mxu0 0.0
        %1147 = vmatpush1.msra.mxu0 0.0
        %1148 = vmatprep.subr.mxu0 0.0
        %1149 = vmatpush1.msra.mxu0 0.0
        %1150 = vmatprep.subr.mxu0 0.0
        %1151 = vmatpush1.msra.mxu0 0.0
        %1152 = vmatprep.subr.mxu0 0.0
        %1153 = vmatpush1.msra.mxu0 0.0
        %1154 = vmatprep.subr.mxu0 0.0
        %1155 = vmatpush1.msra.mxu0 0.0
        %1156 = vmatprep.subr.mxu0 0.0
        %1157 = vmatpush1.msra.mxu0 0.0
        %1158 = vmatprep.subr.mxu0 0.0
        %1159 = vmatpush1.msra.mxu0 0.0
        %1160 = vmatprep.subr.mxu0 0.0
        %1161 = vmatpush1.msra.mxu0 0.0
        %1162 = vmatprep.subr.mxu0 0.0
        %1163 = vmatpush1.msra.mxu0 0.0
        %1164 = vmatprep.subr.mxu0 0.0
        %1165 = vmatpush1.msra.mxu0 0.0
        %1166 = vmatprep.subr.mxu0 0.0
        %1167 = vmatpush1.msra.mxu0 0.0
        %1168 = vmatprep.subr.mxu0 0.0
        %1169 = vmatpush1.msra.mxu0 0.0
        %1170 = vmatprep.subr.mxu0 0.0
        %1171 = vmatpush1.msra.mxu0 0.0
        %1172 = vmatprep.subr.mxu0 0.0
        %1173 = vmatpush1.msra.mxu0 0.0
        %1174 = vmatprep.subr.mxu0 0.0
        %1175 = vmatpush1.msra.mxu0 0.0
        %1176 = vmatprep.subr.mxu0 0.0
        %1177 = vmatpush1.msra.mxu0 0.0
        %1178 = vmatprep.subr.mxu0 0.0
        %1179 = vmatpush1.msra.mxu0 0.0
        %1180 = vmatprep.subr.mxu0 0.0
        %1181 = vmatpush1.msra.mxu0 0.0
        %1182 = vmatprep.subr.mxu0 0.0
        %1183 = vmatpush1.msra.mxu0 0.0
        %1184 = vmatprep.subr.mxu0 0.0
        %1185 = vmatpush1.msra.mxu0 0.0
        %1186 = vmatprep.subr.mxu0 0.0
        %1187 = vmatpush1.msra.mxu0 0.0
        %1188 = vmatprep.subr.mxu0 0.0
        %1189 = vmatpush1.msra.mxu0 0.0
        %1190 = vmatprep.mubr.f32.mxu0 0.0
        %1191 = vmatmul.mubr.f32.gmra.mrb[0].mxu0 %v1124
        %v1192 = vpop.f32.mrb[0].mxu0
        %v1193 = vadd.f32 0.0, %v1192
        %v1194 = vpop.f32.mrb[0].mxu0
        %1195 = vdwg.mxu0
        %1196 = vrot.lane.b32.xlu0 %v587, 48
        %v1197 = vpop.permute.xlu0 %1196
        %v1200 = vsel %vm757, %v1105, 0
        %1202 = vmatprep.subr.mxu0 0.0
        %1203 = vmatpush1.msra.mxu0 %v1197
        %1204 = vmatprep.subr.mxu0 0.0
        %1205 = vmatpush1.msra.mxu0 0.0
        %1206 = vmatprep.subr.mxu0 0.0
        %1207 = vmatpush1.msra.mxu0 0.0
        %1208 = vmatprep.subr.mxu0 0.0
        %1209 = vmatpush1.msra.mxu0 0.0
        %1210 = vmatprep.subr.mxu0 0.0
        %1211 = vmatpush1.msra.mxu0 0.0
        %1212 = vmatprep.subr.mxu0 0.0
        %1213 = vmatpush1.msra.mxu0 0.0
        %1214 = vmatprep.subr.mxu0 0.0
        %1215 = vmatpush1.msra.mxu0 0.0
        %1216 = vmatprep.subr.mxu0 0.0
        %1217 = vmatpush1.msra.mxu0 0.0
        %1218 = vmatprep.subr.mxu0 0.0
        %1219 = vmatpush1.msra.mxu0 0.0
        %1220 = vmatprep.subr.mxu0 0.0
        %1221 = vmatpush1.msra.mxu0 0.0
        %1222 = vmatprep.subr.mxu0 0.0
        %1223 = vmatpush1.msra.mxu0 0.0
        %1224 = vmatprep.subr.mxu0 0.0
        %1225 = vmatpush1.msra.mxu0 0.0
        %1226 = vmatprep.subr.mxu0 0.0
        %1227 = vmatpush1.msra.mxu0 0.0
        %1228 = vmatprep.subr.mxu0 0.0
        %1229 = vmatpush1.msra.mxu0 0.0
        %1230 = vmatprep.subr.mxu0 0.0
        %1231 = vmatpush1.msra.mxu0 0.0
        %1232 = vmatprep.subr.mxu0 0.0
        %1233 = vmatpush1.msra.mxu0 0.0
        %1234 = vmatprep.subr.mxu0 0.0
        %1235 = vmatpush1.msra.mxu0 0.0
        %1236 = vmatprep.subr.mxu0 0.0
        %1237 = vmatpush1.msra.mxu0 0.0
        %1238 = vmatprep.subr.mxu0 0.0
        %1239 = vmatpush1.msra.mxu0 0.0
        %1240 = vmatprep.subr.mxu0 0.0
        %1241 = vmatpush1.msra.mxu0 0.0
        %1242 = vmatprep.subr.mxu0 0.0
        %1243 = vmatpush1.msra.mxu0 0.0
        %1244 = vmatprep.subr.mxu0 0.0
        %1245 = vmatpush1.msra.mxu0 0.0
        %1246 = vmatprep.subr.mxu0 0.0
        %1247 = vmatpush1.msra.mxu0 0.0
        %1248 = vmatprep.subr.mxu0 0.0
        %1249 = vmatpush1.msra.mxu0 0.0
        %1250 = vmatprep.subr.mxu0 0.0
        %1251 = vmatpush1.msra.mxu0 0.0
        %1252 = vmatprep.subr.mxu0 0.0
        %1253 = vmatpush1.msra.mxu0 0.0
        %1254 = vmatprep.subr.mxu0 0.0
        %1255 = vmatpush1.msra.mxu0 0.0
        %1256 = vmatprep.subr.mxu0 0.0
        %1257 = vmatpush1.msra.mxu0 0.0
        %1258 = vmatprep.subr.mxu0 0.0
        %1259 = vmatpush1.msra.mxu0 0.0
        %1260 = vmatprep.subr.mxu0 0.0
        %1261 = vmatpush1.msra.mxu0 0.0
        %1262 = vmatprep.subr.mxu0 0.0
        %1263 = vmatpush1.msra.mxu0 0.0
        %1264 = vmatprep.subr.mxu0 0.0
        %1265 = vmatpush1.msra.mxu0 0.0
        %1266 = vmatprep.mubr.f32.mxu0 0.0
        %1267 = vmatmul.mubr.f32.gmra.mrb[0].mxu0 %v1200
        %v1268 = vpop.f32.mrb[0].mxu0
        %v1269 = vadd.f32 0.0, %v1268
        %v1270 = vpop.f32.mrb[0].mxu0
        %1271 = vdwg.mxu0
        %v1272 = vmul.f32 %v1193, %v1118
        %v1273 = vmul.f32 %v1269, %v1119
        %1276 = vrot.lane.b32.xlu0 %v1272, 16
        %v1277 = vpop.permute.xlu0 %1276
        %1278 = vrot.lane.b32.xlu0 %v1273, 16
        %v1279 = vpop.permute.xlu0 %1278
        %v1282 = vsel %vm605, %v936, %v1277
        %v1283 = vsel %vm605, %v937, %v1279
        %v1284 = vld [vmem:[%s461] sm:$0xff]
        %v1285 = vld [vmem:[%s461 + $0x8] sm:$0xff]
        %v1286 = vld [vmem:[%s461 + $0x10] sm:$0xff]
        %v1287 = vld [vmem:[%s461 + $0x18] sm:$0xff]
        %v1288 = vlaneseq
        %v1289 = vshrl.u32 %v1288, 7
        %v1290 = vsub.s32 0, %v1289
        %v1291 = vrot.slane %v494, %v1290
        %v1293 = vsel %vm508, %v1282, 0
        %v1296 = vsel %vm508, %v1283, 0
        %1298 = vmatprep.subr.mxu0 0.0
        %1299 = vmatpush1.msra.mxu0 %v1284
        %1300 = vmatprep.subr.mxu0 0.0
        %1301 = vmatpush1.msra.mxu0 %v1285
        %1302 = vmatprep.subr.mxu0 0.0
        %1303 = vmatpush1.msra.mxu0 %v1286
        %1304 = vmatprep.subr.mxu0 0.0
        %1305 = vmatpush1.msra.mxu0 %v1287
        %1306 = vmatprep.subr.mxu0 0.0
        %1307 = vmatpush1.msra.mxu0 0.0
        %1308 = vmatprep.subr.mxu0 0.0
        %1309 = vmatpush1.msra.mxu0 0.0
        %1310 = vmatprep.subr.mxu0 0.0
        %1311 = vmatpush1.msra.mxu0 0.0
        %1312 = vmatprep.subr.mxu0 0.0
        %1313 = vmatpush1.msra.mxu0 0.0
        %1314 = vmatprep.subr.mxu0 0.0
        %1315 = vmatpush1.msra.mxu0 0.0
        %1316 = vmatprep.subr.mxu0 0.0
        %1317 = vmatpush1.msra.mxu0 0.0
        %1318 = vmatprep.subr.mxu0 0.0
        %1319 = vmatpush1.msra.mxu0 0.0
        %1320 = vmatprep.subr.mxu0 0.0
        %1321 = vmatpush1.msra.mxu0 0.0
        %1322 = vmatprep.subr.mxu0 0.0
        %1323 = vmatpush1.msra.mxu0 0.0
        %1324 = vmatprep.subr.mxu0 0.0
        %1325 = vmatpush1.msra.mxu0 0.0
        %1326 = vmatprep.subr.mxu0 0.0
        %1327 = vmatpush1.msra.mxu0 0.0
        %1328 = vmatprep.subr.mxu0 0.0
        %1329 = vmatpush1.msra.mxu0 0.0
        %1330 = vmatprep.subr.mxu0 0.0
        %1331 = vmatpush1.msra.mxu0 0.0
        %1332 = vmatprep.subr.mxu0 0.0
        %1333 = vmatpush1.msra.mxu0 0.0
        %1334 = vmatprep.subr.mxu0 0.0
        %1335 = vmatpush1.msra.mxu0 0.0
        %1336 = vmatprep.subr.mxu0 0.0
        %1337 = vmatpush1.msra.mxu0 0.0
        %1338 = vmatprep.subr.mxu0 0.0
        %1339 = vmatpush1.msra.mxu0 0.0
        %1340 = vmatprep.subr.mxu0 0.0
        %1341 = vmatpush1.msra.mxu0 0.0
        %1342 = vmatprep.subr.mxu0 0.0
        %1343 = vmatpush1.msra.mxu0 0.0
        %1344 = vmatprep.subr.mxu0 0.0
        %1345 = vmatpush1.msra.mxu0 0.0
        %1346 = vmatprep.subr.mxu0 0.0
        %1347 = vmatpush1.msra.mxu0 0.0
        %1348 = vmatprep.subr.mxu0 0.0
        %1349 = vmatpush1.msra.mxu0 0.0
        %1350 = vmatprep.subr.mxu0 0.0
        %1351 = vmatpush1.msra.mxu0 0.0
        %1352 = vmatprep.subr.mxu0 0.0
        %1353 = vmatpush1.msra.mxu0 0.0
        %1354 = vmatprep.subr.mxu0 0.0
        %1355 = vmatpush1.msra.mxu0 0.0
        %1356 = vmatprep.subr.mxu0 0.0
        %1357 = vmatpush1.msra.mxu0 0.0
        %1358 = vmatprep.subr.mxu0 0.0
        %1359 = vmatpush1.msra.mxu0 0.0
        %1360 = vmatprep.subr.mxu0 0.0
        %1361 = vmatpush1.msra.mxu0 0.0
        %1362 = vmatprep.mubr.f32.mxu0 0.0
        %1363 = vmatmul.mubr.f32.gmra.mrb[0].mxu0 %v1293
        %v1364 = vpop.f32.mrb[0].mxu0
        %v1365 = vadd.f32 %v1291, %v1364
        %v1366 = vpop.f32.mrb[0].mxu0
        %1367 = vmatprep.mubr.f32.mxu0 0.0
        %1368 = vmatmul.mubr.f32.gmra.mrb[0].mxu0 %v1296
        %v1369 = vpop.f32.mrb[0].mxu0
        %v1370 = vadd.f32 %v1291, %v1369
        %v1371 = vpop.f32.mrb[0].mxu0
        %1372 = vdwg.mxu0
        %v1373 = vadd.f32 %v1365, %v492
        %v1374 = vadd.f32 %v1370, %v493
        %v1375 = vsel %vm508, %v1373, 0.0
        %1376 = vadd.xlane.f32.xlu0 %v1375
        %v1377 = vpop.xlane.xlu0 %1376
        %v1378 = vsel %vm508, %v1374, 0.0
        %1379 = vadd.xlane.f32.xlu0 %v1378
        %v1380 = vpop.xlane.xlu0 %1379
        %v1381 = vrcp.pop 32.0
        %v1382 = vmul.f32 %v1377, %v1381
        %v1383 = vmul.f32 %v1380, %v1381
        %v1384 = vsub.f32 %v1373, %v1382
        %v1385 = vsub.f32 %v1374, %v1383
        %v1386 = vmul.f32 %v1384, %v1384
        %v1387 = vmul.f32 %v1385, %v1385
        %v1388 = vsel %vm508, %v1386, 0.0
        %1389 = vadd.xlane.f32.xlu0 %v1388
        %v1390 = vpop.xlane.xlu0 %1389
        %v1391 = vsel %vm508, %v1387, 0.0
        %1392 = vadd.xlane.f32.xlu0 %v1391
        %v1393 = vpop.xlane.xlu0 %1392
        %v1394 = vrcp.pop 31.0
        %v1395 = vmul.f32 %v1390, %v1394
        %v1396 = vmul.f32 %v1393, %v1394
        %v1397 = vrsqrt.pop %v1395
        %v1398 = vmul.f32 %v1395, %v1397
        %vm1399 = vcmp.eq.f32.partialorder %v1395, inf
        %v1400 = vsel %vm1399, %v1395, %v1398
        %vm1401 = vcmp.eq.f32.partialorder %v1395, 0.0
        %v1402 = vand.u32 %v1395, 2147483648
        %v1403 = vsel %vm1401, %v1402, %v1400
        %v1404 = vrsqrt.pop %v1396
        %v1405 = vmul.f32 %v1396, %v1404
        %vm1406 = vcmp.eq.f32.partialorder %v1396, inf
        %v1407 = vsel %vm1406, %v1396, %v1405
        %vm1408 = vcmp.eq.f32.partialorder %v1396, 0.0
        %v1409 = vand.u32 %v1396, 2147483648
        %v1410 = vsel %vm1408, %v1409, %v1407
        %v1411 = vadd.f32 %v1403, 1e-06
        %v1412 = vadd.f32 %v1410, 1e-06
        %v1413 = vrcp.pop %v1411
        %v1414 = vrcp.pop %v1412
        %v1415 = vmul.f32 %v1384, %v1413
        %v1416 = vmul.f32 %v1385, %v1414
        %v1417 = vlaneseq
        %v1418 = vshrl.u32 %v1417, 7
        %v1419 = vsub.s32 1, %v1418
        %v1420 = vrot.slane %v494, %v1419
        %v1421 = vmul.f32 %v1420, %v1415
        %v1422 = vmul.f32 %v1420, %v1416
        %v1423 = vlaneseq
        %v1424 = vshrl.u32 %v1423, 7
        %v1425 = vsub.s32 2, %v1424
        %v1426 = vrot.slane %v494, %v1425
        %v1427 = vadd.f32 %v1421, %v1426
        %v1428 = vadd.f32 %v1422, %v1426
        %v1429 = vld [vmem:[%s466] sm:$0xff]
        %v1430 = vld [vmem:[%s466 + $0x8] sm:$0xff]
        %v1431 = vld [vmem:[%s466 + $0x10] sm:$0xff]
        %v1432 = vld [vmem:[%s466 + $0x18] sm:$0xff]
        %v1433 = vld [vmem:[%s477] sm:$0x1]
        %v1435 = vlaneseq
        %v1436 = vshrl.u32 %v1435, 7
        %v1437 = vsub.s32 0, %v1436
        %v1438 = vrot.slane %v1433, %v1437
        %v1441 = vsel %vm508, %v1427, 0
        %v1444 = vsel %vm508, %v1428, 0
        %1446 = vmatprep.subr.mxu0 0.0
        %1447 = vmatpush1.msra.mxu0 %v1429
        %1448 = vmatprep.subr.mxu0 0.0
        %1449 = vmatpush1.msra.mxu0 %v1430
        %1450 = vmatprep.subr.mxu0 0.0
        %1451 = vmatpush1.msra.mxu0 %v1431
        %1452 = vmatprep.subr.mxu0 0.0
        %1453 = vmatpush1.msra.mxu0 %v1432
        %1454 = vmatprep.subr.mxu0 0.0
        %1455 = vmatpush1.msra.mxu0 0.0
        %1456 = vmatprep.subr.mxu0 0.0
        %1457 = vmatpush1.msra.mxu0 0.0
        %1458 = vmatprep.subr.mxu0 0.0
        %1459 = vmatpush1.msra.mxu0 0.0
        %1460 = vmatprep.subr.mxu0 0.0
        %1461 = vmatpush1.msra.mxu0 0.0
        %1462 = vmatprep.subr.mxu0 0.0
        %1463 = vmatpush1.msra.mxu0 0.0
        %1464 = vmatprep.subr.mxu0 0.0
        %1465 = vmatpush1.msra.mxu0 0.0
        %1466 = vmatprep.subr.mxu0 0.0
        %1467 = vmatpush1.msra.mxu0 0.0
        %1468 = vmatprep.subr.mxu0 0.0
        %1469 = vmatpush1.msra.mxu0 0.0
        %1470 = vmatprep.subr.mxu0 0.0
        %1471 = vmatpush1.msra.mxu0 0.0
        %1472 = vmatprep.subr.mxu0 0.0
        %1473 = vmatpush1.msra.mxu0 0.0
        %1474 = vmatprep.subr.mxu0 0.0
        %1475 = vmatpush1.msra.mxu0 0.0
        %1476 = vmatprep.subr.mxu0 0.0
        %1477 = vmatpush1.msra.mxu0 0.0
        %1478 = vmatprep.subr.mxu0 0.0
        %1479 = vmatpush1.msra.mxu0 0.0
        %1480 = vmatprep.subr.mxu0 0.0
        %1481 = vmatpush1.msra.mxu0 0.0
        %1482 = vmatprep.subr.mxu0 0.0
        %1483 = vmatpush1.msra.mxu0 0.0
        %1484 = vmatprep.subr.mxu0 0.0
        %1485 = vmatpush1.msra.mxu0 0.0
        %1486 = vmatprep.subr.mxu0 0.0
        %1487 = vmatpush1.msra.mxu0 0.0
        %1488 = vmatprep.subr.mxu0 0.0
        %1489 = vmatpush1.msra.mxu0 0.0
        %1490 = vmatprep.subr.mxu0 0.0
        %1491 = vmatpush1.msra.mxu0 0.0
        %1492 = vmatprep.subr.mxu0 0.0
        %1493 = vmatpush1.msra.mxu0 0.0
        %1494 = vmatprep.subr.mxu0 0.0
        %1495 = vmatpush1.msra.mxu0 0.0
        %1496 = vmatprep.subr.mxu0 0.0
        %1497 = vmatpush1.msra.mxu0 0.0
        %1498 = vmatprep.subr.mxu0 0.0
        %1499 = vmatpush1.msra.mxu0 0.0
        %1500 = vmatprep.subr.mxu0 0.0
        %1501 = vmatpush1.msra.mxu0 0.0
        %1502 = vmatprep.subr.mxu0 0.0
        %1503 = vmatpush1.msra.mxu0 0.0
        %1504 = vmatprep.subr.mxu0 0.0
        %1505 = vmatpush1.msra.mxu0 0.0
        %1506 = vmatprep.subr.mxu0 0.0
        %1507 = vmatpush1.msra.mxu0 0.0
        %1508 = vmatprep.subr.mxu0 0.0
        %1509 = vmatpush1.msra.mxu0 0.0
        %1510 = vmatprep.mubr.f32.mxu0 0.0
        %1511 = vmatmul.mubr.f32.gmra.mrb[0].mxu0 %v1441
        %v1512 = vpop.f32.mrb[0].mxu0
        %v1513 = vadd.f32 %v1438, %v1512
        %v1514 = vpop.f32.mrb[0].mxu0
        %1515 = vmatprep.mubr.f32.mxu0 0.0
        %1516 = vmatmul.mubr.f32.gmra.mrb[0].mxu0 %v1444
        %v1517 = vpop.f32.mrb[0].mxu0
        %v1518 = vadd.f32 %v1438, %v1517
        %v1519 = vpop.f32.mrb[0].mxu0
        %1520 = vdwg.mxu0
        %v1521 = vmul.f32 %v1513, 0.5
        %v1522 = vmul.f32 %v1518, 0.5
        %v1523 = vmul.f32 %v1513, 0.70710677
        %v1524 = vmul.f32 %v1518, 0.70710677
        %v1525 = vand.u32 2147483647, %v1523
        %v1526 = vand.u32 2147483647, %v1524
        %v1527 = vmul.f32 %v1525, 0.3275911
        %v1528 = vmul.f32 %v1526, 0.3275911
        %v1529 = vadd.f32 %v1527, 1.0
        %v1530 = vadd.f32 %v1528, 1.0
        %v1531 = vrcp.pop %v1529
        %v1532 = vmul.f32 1.0, %v1531
        %v1533 = vrcp.pop %v1530
        %v1534 = vmul.f32 1.0, %v1533
        %v1535 = vmul.f32 %v1532, 1.0614054
        %v1536 = vmul.f32 %v1534, 1.0614054
        %v1537 = vadd.f32 %v1535, -1.4531521
        %v1538 = vadd.f32 %v1536, -1.4531521
        %v1539 = vmul.f32 %v1537, %v1532
        %v1540 = vmul.f32 %v1538, %v1534
        %v1541 = vadd.f32 %v1539, 1.4214138
        %v1542 = vadd.f32 %v1540, 1.4214138
        %v1543 = vmul.f32 %v1541, %v1532
        %v1544 = vmul.f32 %v1542, %v1534
        %v1545 = vadd.f32 %v1543, -0.28449672
        %v1546 = vadd.f32 %v1544, -0.28449672
        %v1547 = vmul.f32 %v1545, %v1532
        %v1548 = vmul.f32 %v1546, %v1534
        %v1549 = vadd.f32 %v1547, 0.2548296
        %v1550 = vadd.f32 %v1548, 0.2548296
        %v1551 = vmul.f32 %v1549, %v1532
        %v1552 = vmul.f32 %v1550, %v1534
        %v1553 = vmul.f32 %v1525, %v1525
        %v1554 = vmul.f32 %v1526, %v1526
        %v1555 = vsub.f32 0.0, %v1553
        %v1556 = vsub.f32 0.0, %v1554
        %v1557 = vmul.f32 %v1555, 1.442695
        %v1558 = vpow.pop %v1557
        %v1559 = vmul.f32 %v1556, 1.442695
        %v1560 = vpow.pop %v1559
        %v1561 = vmul.f32 %v1551, %v1558
        %v1562 = vmul.f32 %v1552, %v1560
        %v1563 = vsub.f32 1.0, %v1561
        %v1564 = vsub.f32 1.0, %v1562
        %vm1565 = vcmp.lt.f32.partialorder %v1523, 0.0
        %vm1566 = vcmp.lt.f32.partialorder %v1524, 0.0
        %v1567 = vsub.f32 0.0, %v1563
        %v1568 = vsub.f32 0.0, %v1564
        %v1569 = vsel %vm1565, %v1567, %v1563
        %v1570 = vsel %vm1566, %v1568, %v1564
        %v1571 = vadd.f32 %v1569, 1.0
        %v1572 = vadd.f32 %v1570, 1.0
        %v1573 = vmul.f32 %v1521, %v1571
        %v1574 = vmul.f32 %v1522, %v1572
        %v1575 = vld [vmem:[%s471] sm:$0xff]
        %v1576 = vld [vmem:[%s471 + $0x8] sm:$0xff]
        %v1577 = vld [vmem:[%s471 + $0x10] sm:$0xff]
        %v1578 = vld [vmem:[%s471 + $0x18] sm:$0xff]
        %v1579 = vld [vmem:[%s471 + $0x20] sm:$0xff]
        %v1580 = vld [vmem:[%s471 + $0x28] sm:$0xff]
        %v1581 = vld [vmem:[%s471 + $0x30] sm:$0xff]
        %v1582 = vld [vmem:[%s471 + $0x38] sm:$0xff]
        %v1583 = vlaneseq
        %v1584 = vshrl.u32 %v1583, 7
        %v1585 = vsub.s32 3, %v1584
        %v1586 = vrot.slane %v494, %v1585
        %vm1587 = vcmask 523264
        %v1589 = vsel %vm1587, %v1573, 0
        %v1592 = vsel %vm1587, %v1574, 0
        %1594 = vmatprep.subr.mxu0 0.0
        %1595 = vmatpush1.msra.mxu0 %v1575
        %1596 = vmatprep.subr.mxu0 0.0
        %1597 = vmatpush1.msra.mxu0 %v1576
        %1598 = vmatprep.subr.mxu0 0.0
        %1599 = vmatpush1.msra.mxu0 %v1577
        %1600 = vmatprep.subr.mxu0 0.0
        %1601 = vmatpush1.msra.mxu0 %v1578
        %1602 = vmatprep.subr.mxu0 0.0
        %1603 = vmatpush1.msra.mxu0 %v1579
        %1604 = vmatprep.subr.mxu0 0.0
        %1605 = vmatpush1.msra.mxu0 %v1580
        %1606 = vmatprep.subr.mxu0 0.0
        %1607 = vmatpush1.msra.mxu0 %v1581
        %1608 = vmatprep.subr.mxu0 0.0
        %1609 = vmatpush1.msra.mxu0 %v1582
        %1610 = vmatprep.subr.mxu0 0.0
        %1611 = vmatpush1.msra.mxu0 0.0
        %1612 = vmatprep.subr.mxu0 0.0
        %1613 = vmatpush1.msra.mxu0 0.0
        %1614 = vmatprep.subr.mxu0 0.0
        %1615 = vmatpush1.msra.mxu0 0.0
        %1616 = vmatprep.subr.mxu0 0.0
        %1617 = vmatpush1.msra.mxu0 0.0
        %1618 = vmatprep.subr.mxu0 0.0
        %1619 = vmatpush1.msra.mxu0 0.0
        %1620 = vmatprep.subr.mxu0 0.0
        %1621 = vmatpush1.msra.mxu0 0.0
        %1622 = vmatprep.subr.mxu0 0.0
        %1623 = vmatpush1.msra.mxu0 0.0
        %1624 = vmatprep.subr.mxu0 0.0
        %1625 = vmatpush1.msra.mxu0 0.0
        %1626 = vmatprep.subr.mxu0 0.0
        %1627 = vmatpush1.msra.mxu0 0.0
        %1628 = vmatprep.subr.mxu0 0.0
        %1629 = vmatpush1.msra.mxu0 0.0
        %1630 = vmatprep.subr.mxu0 0.0
        %1631 = vmatpush1.msra.mxu0 0.0
        %1632 = vmatprep.subr.mxu0 0.0
        %1633 = vmatpush1.msra.mxu0 0.0
        %1634 = vmatprep.subr.mxu0 0.0
        %1635 = vmatpush1.msra.mxu0 0.0
        %1636 = vmatprep.subr.mxu0 0.0
        %1637 = vmatpush1.msra.mxu0 0.0
        %1638 = vmatprep.subr.mxu0 0.0
        %1639 = vmatpush1.msra.mxu0 0.0
        %1640 = vmatprep.subr.mxu0 0.0
        %1641 = vmatpush1.msra.mxu0 0.0
        %1642 = vmatprep.subr.mxu0 0.0
        %1643 = vmatpush1.msra.mxu0 0.0
        %1644 = vmatprep.subr.mxu0 0.0
        %1645 = vmatpush1.msra.mxu0 0.0
        %1646 = vmatprep.subr.mxu0 0.0
        %1647 = vmatpush1.msra.mxu0 0.0
        %1648 = vmatprep.subr.mxu0 0.0
        %1649 = vmatpush1.msra.mxu0 0.0
        %1650 = vmatprep.subr.mxu0 0.0
        %1651 = vmatpush1.msra.mxu0 0.0
        %1652 = vmatprep.subr.mxu0 0.0
        %1653 = vmatpush1.msra.mxu0 0.0
        %1654 = vmatprep.subr.mxu0 0.0
        %1655 = vmatpush1.msra.mxu0 0.0
        %1656 = vmatprep.subr.mxu0 0.0
        %1657 = vmatpush1.msra.mxu0 0.0
        %1658 = vmatprep.mubr.f32.mxu0 0.0
        %1659 = vmatmul.mubr.f32.gmra.mrb[0].mxu0 %v1589
        %v1660 = vpop.f32.mrb[0].mxu0
        %v1661 = vadd.f32 %v1586, %v1660
        %v1662 = vpop.f32.mrb[0].mxu0
        %1663 = vmatprep.mubr.f32.mxu0 0.0
        %1664 = vmatmul.mubr.f32.gmra.mrb[0].mxu0 %v1592
        %v1665 = vpop.f32.mrb[0].mxu0
        %v1666 = vadd.f32 %v1586, %v1665
        %v1667 = vpop.f32.mrb[0].mxu0
        %1668 = vdwg.mxu0
        %v1669 = vadd.f32 %v1661, %v1427
        %v1670 = vadd.f32 %v1666, %v1428
        %v1671 = vsel %vm508, %v1669, 0.0
        %1672 = vadd.xlane.f32.xlu0 %v1671
        %v1673 = vpop.xlane.xlu0 %1672
        %v1674 = vsel %vm508, %v1670, 0.0
        %1675 = vadd.xlane.f32.xlu0 %v1674
        %v1676 = vpop.xlane.xlu0 %1675
        %v1677 = vmul.f32 %v1673, %v1381
        %v1678 = vmul.f32 %v1676, %v1381
        %v1679 = vsub.f32 %v1669, %v1677
        %v1680 = vsub.f32 %v1670, %v1678
        %v1681 = vmul.f32 %v1679, %v1679
        %v1682 = vmul.f32 %v1680, %v1680
        %v1683 = vsel %vm508, %v1681, 0.0
        %1684 = vadd.xlane.f32.xlu0 %v1683
        %v1685 = vpop.xlane.xlu0 %1684
        %v1686 = vsel %vm508, %v1682, 0.0
        %1687 = vadd.xlane.f32.xlu0 %v1686
        %v1688 = vpop.xlane.xlu0 %1687
        %v1689 = vmul.f32 %v1685, %v1394
        %v1690 = vmul.f32 %v1688, %v1394
        %v1691 = vrsqrt.pop %v1689
        %v1692 = vmul.f32 %v1689, %v1691
        %vm1693 = vcmp.eq.f32.partialorder %v1689, inf
        %v1694 = vsel %vm1693, %v1689, %v1692
        %vm1695 = vcmp.eq.f32.partialorder %v1689, 0.0
        %v1696 = vand.u32 %v1689, 2147483648
        %v1697 = vsel %vm1695, %v1696, %v1694
        %v1698 = vrsqrt.pop %v1690
        %v1699 = vmul.f32 %v1690, %v1698
        %vm1700 = vcmp.eq.f32.partialorder %v1690, inf
        %v1701 = vsel %vm1700, %v1690, %v1699
        %vm1702 = vcmp.eq.f32.partialorder %v1690, 0.0
        %v1703 = vand.u32 %v1690, 2147483648
        %v1704 = vsel %vm1702, %v1703, %v1701
        %v1705 = vadd.f32 %v1697, 1e-06
        %v1706 = vadd.f32 %v1704, 1e-06
        %v1707 = vrcp.pop %v1705
        %v1708 = vrcp.pop %v1706
        %v1709 = vmul.f32 %v1679, %v1707
        %v1710 = vmul.f32 %v1680, %v1708
        %v1711 = vlaneseq
        %v1712 = vshrl.u32 %v1711, 7
        %v1713 = vsub.s32 4, %v1712
        %v1714 = vrot.slane %v494, %v1713
        %v1715 = vmul.f32 %v1714, %v1709
        %v1716 = vmul.f32 %v1714, %v1710
        %v1717 = vlaneseq
        %v1718 = vshrl.u32 %v1717, 7
        %v1719 = vsub.s32 5, %v1718
        %v1720 = vrot.slane %v494, %v1719
        %v1721 = vadd.f32 %v1715, %v1720
        %v1722 = vadd.f32 %v1716, %v1720
        %1723 = vst.msk [vmem:[#allocation2] sm:$0xff] %vm508, %v1721
        %1724 = vst.msk [vmem:[#allocation2 + $0x8] sm:$0xff] %vm508, %v1722
        %p1725 = scmp.eq.s32.totalorder %s26, 1
        // Predicated region
        $region61: #{tpu_custom_call.1} parent=55 // pred_check
          %p1726 = pneg %p1725
        $region62: #{tpu_custom_call.1} parent=55 // pred_check_branch
          %1728 = sbr.rel (%p1726) target = $region64
        $region63: #{tpu_custom_call.1} parent=55 // pred_region
          %1729 = vst.msk [vmem:[#allocation3] sm:$0xff] %vm508, %v1721
          %1730 = vst.msk [vmem:[#allocation3 + $0x8] sm:$0xff] %vm508, %v1722
        $region64: #{tpu_custom_call.1} parent=55 // pred_fallthru
          _
        // Predicated region
        $region65: #{tpu_custom_call.1} parent=55 // pred_check
          %p1731 = pneg %p285
        $region66: #{tpu_custom_call.1} parent=55 // pred_check_branch
          %1733 = sbr.rel (%p1731) target = $region68
        $region67: #{tpu_custom_call.1} parent=55 // pred_region
          %s1734 = smul.u32 2, %s25
          %s1736 = ssub.s32 256, 256
          %1737 = vsyncadd [#allocation4], %s1736
          %s1738 = smul.addr %s1734, 128
          %s1739 = scalar_lea.hbm %s9, %s1738
          %s1740 = sshll.u32 [#allocation3], 4
          %s1741 = int_to_ptr.vmem [resolvable:$true] %s1740
          %1746 = dma.vmem_to_hbm [thread:$0]  %s1741, 256, %s1739, [#allocation4], 128, 128, 8
        $region68: #{tpu_custom_call.1} parent=55 // pred_fallthru
          _
        // Predicated region
        $region69: #{tpu_custom_call.1} parent=55 // pred_check
          %p1747 = pneg %p285
        $region70: #{tpu_custom_call.1} parent=55 // pred_check_branch
          %1749 = sbr.rel (%p1747) target = $region72
        $region71: #{tpu_custom_call.1} parent=55 // pred_region
          %1750 = dma.done [#allocation4], 256
        $region72: #{tpu_custom_call.1} parent=55 // pred_fallthru
          _
      $region56: #{tpu_custom_call.1} parent=5 // pred_fallthru
        _
      %p1751 = scmp.le.s32.totalorder 2, %s16
      // Predicated region
      $region73: #{tpu_custom_call.1} parent=5 // pred_check
        %p1752 = pneg %p1751
      $region74: #{tpu_custom_call.1} parent=5 // pred_check_branch
        %1754 = sbr.rel (%p1752) target = $region76
      $region75: #{tpu_custom_call.1} parent=5 // pred_region
        %s1755 = ssub.s32 %s16, 2
      $region76: #{tpu_custom_call.1} parent=5 // pred_fallthru
        _
    $region6: #{tpu_custom_call.1} parent=1 // loop_footer
      %s20 = sadd.s32 1, %s16
    $region7: #{tpu_custom_call.1} parent=1 // loop_footer_branch
      %15 = sbr.rel target = $region3
    $region8: #{tpu_custom_call.1} parent=1 // loop_exit
      _
    %1756 = vsyncpa [#allocation4], 1
    %s1757 = scalar_lea.sflag [#allocation4], 1
    %1758 = vsyncpa %s1757, 1

</llo_original>
